<compile_context>
chip_gen: v7x
topology: tpu7x:2x2x1
jax: 0.10.0
libtpu: 0.0.40
codegen_flags: <defaults>
</compile_context>

<pallas_src>
import functools

import jax
import jax.numpy as jnp
from jax.experimental import pallas as pl
from jax.experimental.pallas import tpu as pltpu


def _round_up(v, m):
    return (v + m - 1) // m * m


def _vmem_capacity_bytes():
    """Per-TensorCore VMEM capacity; conservative fallback if the query fails."""
    try:
        return int(pltpu.get_tpu_info().vmem_capacity_bytes)
    except Exception:
        return 64 * 1024 * 1024  # v7x per-TC VMEM (smallest of current gens)


def _choose_tile_m(batch, n_pad, out_pad, resident_bytes, vmem_capacity):
    """Batch tile size.

    * multiple of 16 (bf16 sublane packing), 128/256-aligned when large,
    * >= 2 grid steps when batch > 16 (so v7x's second TC gets work),
    * double-buffered f32 x / out tiles fit in VMEM left over after the
      (single-buffered) resident weights.
    """
    avail = max(vmem_capacity - resident_bytes - (2 << 20), 0)
    per_row = 2 * (n_pad + out_pad) * 4          # double-buffered f32 in + out
    tm_cap = max(16, (avail // max(per_row, 1)) // 16 * 16)

    if batch <= 16:
        tm = _round_up(batch, 16)
    else:
        tm = _round_up(pl.cdiv(batch, 2), 16)    # at least 2 grid steps
    tm = min(tm, tm_cap, 1024)

    if tm >= 256:
        tm = (tm // 256) * 256                   # v6e/v7x MXU is 2x256^2
    elif tm >= 128:
        tm = (tm // 128) * 128                   # v5e MXU is 4x128^2
    else:
        tm = (tm // 16) * 16
    return max(16, tm)


def _mlp_kernel(widths, *refs):
    """Fused MLP forward over one batch tile.

    widths: padded output width of each linear layer (static tuple, len L+1).
    refs = (x_ref,                 # (TM, n_pad)            f32
            b_ref,                 # (L+1, max_width)       f32 stacked biases
            w0_ref, ..., wL_ref,   # (in_pad_i, out_pad_i)  bf16
            z_ref)                 # (TM, out_pad)          f32 fused output
    """
    n_linear = len(widths)
    x_ref, b_ref = refs[0], refs[1]
    w_refs = refs[2:2 + n_linear]
    z_ref = refs[2 + n_linear]

    h = x_ref[...].astype(jnp.bfloat16)          # in-kernel cast: f32 HBM traffic only
    for i in range(n_linear):
        w = w_refs[i][...]                       # bf16 MXU operand
        acc = jnp.dot(h, w, preferred_element_type=jnp.float32)
        acc = acc + b_ref[i:i + 1, :widths[i]]   # f32 bias row (static slice)
        if i < n_linear - 1:
            h = jnp.tanh(acc).astype(jnp.bfloat16)   # tanh in f32, bf16 for next MXU op
        else:
            z_ref[...] = acc.astype(z_ref.dtype)     # lane-dense unmasked store


def prepare_inference_network_params(params):
    """ONE-TIME preprocessing of the (W, b) list (do NOT call per forward).

    * weights -> bf16, zero-padded to 128-lane multiples, stored (in, out)
    * biases  -> single stacked f32 array (n_linear, max_width)
    """
    dims = [w.shape[0] for (w, _) in params] + [params[-1][0].shape[1]]
    pdims = [_round_up(d, 128) for d in dims]
    max_w = max(pdims[1:])

    weights, bias_rows = [], []
    for i, (w, b) in enumerate(params):
        wp = jnp.pad(w.astype(jnp.bfloat16),
                     ((0, pdims[i] - w.shape[0]), (0, pdims[i + 1] - w.shape[1])))
        weights.append(wp)
        bias_rows.append(jnp.pad(b.reshape(-1).astype(jnp.float32),
                                 (0, max_w - b.size)))
    biases = jnp.stack(bias_rows)                # (n_linear, max_w) f32
    return {"weights": weights, "biases": biases,
            "dims": tuple(dims), "pdims": tuple(pdims)}


def inference_network_forward(x, prepared, latent_dim):
    """Forward pass. `prepared` comes from prepare_inference_network_params."""
    batch = x.shape[0]
    x_flat = x.reshape(batch, -1).astype(jnp.float32)   # torch: x.view(x.size(0), -1)
    n = x_flat.shape[1]

    dims, pdims = prepared["dims"], prepared["pdims"]
    weights, biases = prepared["weights"], prepared["biases"]
    assert n == dims[0], f"input feature size {n} != model n {dims[0]}"
    n_pad, out_pad = pdims[0], pdims[-1]
    widths = tuple(pdims[1:])

    resident_bytes = (sum(w.size * w.dtype.itemsize for w in weights)
                      + biases.size * biases.dtype.itemsize)
    vmem_cap = _vmem_capacity_bytes()
    tm = _choose_tile_m(batch, n_pad, out_pad, resident_bytes, vmem_cap)
    bp = _round_up(batch, tm)

    # Pad activations only if actually needed (no-op at aligned shapes).
    if bp != batch or n_pad != n:
        x_flat = jnp.pad(x_flat, ((0, bp - batch), (0, n_pad - n)))

    # VMEM limit: worst-case (double-buffered) weight residency + pipelined
    # activation tiles + compiler slack, clipped to chip capacity.
    needed = (2 * resident_bytes
              + 2 * tm * n_pad * 4 + 2 * tm * out_pad * 4
              + (4 << 20))
    vmem_limit = int(min(vmem_cap, max(needed, 16 << 20)))

    flops = 2 * bp * sum(pdims[i] * pdims[i + 1] for i in range(len(pdims) - 1))
    transcendentals = bp * sum(pdims[1:-1])
    bytes_accessed = (x_flat.size * 4 + resident_bytes + bp * out_pad * 4)

    kernel = functools.partial(_mlp_kernel, widths)

    def _run(single_buffer_resident):
        def resident_spec(shape):
            # Constant index_map: the block never changes across grid steps,
            # so single-buffering it halves its VMEM footprint.
            if single_buffer_resident:
                return pl.BlockSpec(shape, lambda i: (0, 0),
                                    pipeline_mode=pl.Buffered(1))
            return pl.BlockSpec(shape, lambda i: (0, 0))

        in_specs = ([pl.BlockSpec((tm, n_pad), lambda i: (i, 0)),
                     resident_spec(biases.shape)]
                    + [resident_spec(w.shape) for w in weights])
        return pl.pallas_call(
            kernel,
            out_shape=jax.ShapeDtypeStruct((bp, out_pad), jnp.float32),
            grid=(bp // tm,),
            in_specs=in_specs,
            out_specs=pl.BlockSpec((tm, out_pad), lambda i: (i, 0)),
            compiler_params=pltpu.CompilerParams(
                dimension_semantics=("parallel",),
                vmem_limit_bytes=vmem_limit),
            cost_estimate=pl.CostEstimate(flops=flops,
                                          transcendentals=transcendentals,
                                          bytes_accessed=bytes_accessed),
        )(x_flat, biases, *weights)

    try:
        z = _run(True)
    except Exception:
        # Fallback for JAX versions that reject pipeline_mode on top-level
        # pallas_call BlockSpecs: default double-buffering.
        z = _run(False)

    # Zero-cost XLA slices outside the kernel: un-pad and split mu / logstd.
    z = z[:batch, :2 * latent_dim]
    return z[:, :latent_dim], z[:, latent_dim:]


def init_inference_network_params(key, n, latent_dim, hidden_dim, num_layers=1):
    """Deterministic init matching the PyTorch module's layer shapes.

    U(-1/sqrt(fan_in), 1/sqrt(fan_in)) for weights and biases (PyTorch default
    style).  Weights are stored (in, out) for the kernel (y = x @ W + b).
    """
    dims = [n] + [hidden_dim] * num_layers + [2 * latent_dim]
    params = []
    for i in range(len(dims) - 1):
        fan_in, fan_out = dims[i], dims[i + 1]
        key, kw, kb = jax.random.split(key, 3)
        bound = 1.0 / jnp.sqrt(jnp.float32(fan_in))
        w = jax.random.uniform(kw, (fan_in, fan_out), jnp.float32, -bound, bound)
        b = jax.random.uniform(kb, (1, fan_out), jnp.float32, -bound, bound)
        params.append((w, b))
    return params


def _reference_forward(x, params, latent_dim):
    """Pure-JAX f32 reference for a correctness sanity check."""
    h = x.reshape(x.shape[0], -1).astype(jnp.float32)
    for (w, b) in params[:-1]:
        h = jnp.tanh(h @ w + b)
    w, b = params[-1]
    z = h @ w + b
    return z[:, :latent_dim], z[:, latent_dim:]


if __name__ == "__main__":
    # Small shapes consistent with the module: NCHW image input flattened to n.
    B, C, H, W = 2, 4, 16, 16
    n = C * H * W              # 1024
    latent_dim = 8
    hidden_dim = 32
    num_layers = 2             # two hidden Linear+Tanh blocks

    key = jax.random.PRNGKey(0)
    key, kx = jax.random.split(key)
    x = jax.random.normal(kx, (B, C, H, W), jnp.float32)

    raw_params = init_inference_network_params(key, n, latent_dim, hidden_dim, num_layers)
    # One-time parameter preprocessing (padded bf16 weights, stacked f32 biases).
    prepared = prepare_inference_network_params(raw_params)
    prepared["weights"] = [jax.block_until_ready(w) for w in prepared["weights"]]
    prepared["biases"] = jax.block_until_ready(prepared["biases"])

    mu, logstd = inference_network_forward(x, prepared, latent_dim)
    mu = jax.block_until_ready(mu)
    logstd = jax.block_until_ready(logstd)

    # Sanity check against the f32 reference (kernel uses bf16 MXU operands
    # with f32 accumulation, so tolerance is widened accordingly).
    ref_mu, ref_logstd = _reference_forward(x, raw_params, latent_dim)
    assert mu.shape == (B, latent_dim) and logstd.shape == (B, latent_dim)
    assert jnp.allclose(mu, ref_mu, atol=3e-2, rtol=3e-2)
    assert jnp.allclose(logstd, ref_logstd, atol=3e-2, rtol=3e-2)

    print("KERNEL_OK")
</pallas_src>

<mosaic_0001>
module attributes {stable_mosaic.version = 11 : i64} {
  func.func @_mlp_kernel(%arg0: i32, %arg1: memref<16x1024xf32, #tpu.memory_space<vmem>>, %arg2: memref<3x128xf32, #tpu.memory_space<vmem>>, %arg3: memref<1024x128xbf16, #tpu.memory_space<vmem>>, %arg4: memref<128x128xbf16, #tpu.memory_space<vmem>>, %arg5: memref<128x128xbf16, #tpu.memory_space<vmem>>, %arg6: memref<16x128xf32, #tpu.memory_space<vmem>>) attributes {dimension_semantics = [#tpu.dimension_semantics<parallel>], iteration_bounds = array<i64: 1>, scalar_prefetch = 0 : i64, scratch_operands = 0 : i64, tpu.core_type = #tpu.core_type<tc>, window_params = [{transform_indices = @transform_0, window_bounds = array<i64: 16, 1024>}, {pipeline_mode = #tpu.pipeline_mode<synchronous>, transform_indices = @transform_1, window_bounds = array<i64: 3, 128>}, {pipeline_mode = #tpu.pipeline_mode<synchronous>, transform_indices = @transform_2, window_bounds = array<i64: 1024, 128>}, {pipeline_mode = #tpu.pipeline_mode<synchronous>, transform_indices = @transform_3, window_bounds = array<i64: 128, 128>}, {pipeline_mode = #tpu.pipeline_mode<synchronous>, transform_indices = @transform_4, window_bounds = array<i64: 128, 128>}, {transform_indices = @transform_5, window_bounds = array<i64: 16, 128>}]} {
    %c0 = arith.constant 0 : index
    %c0_0 = arith.constant 0 : index
    %0 = vector.load %arg1[%c0, %c0_0] : memref<16x1024xf32, #tpu.memory_space<vmem>>, vector<16x1024xf32>
    %1 = arith.truncf %0 : vector<16x1024xf32> to vector<16x1024xbf16>
    %c0_1 = arith.constant 0 : index
    %c0_2 = arith.constant 0 : index
    %2 = vector.load %arg3[%c0_1, %c0_2] : memref<1024x128xbf16, #tpu.memory_space<vmem>>, vector<1024x128xbf16>
    %cst = arith.constant dense<0.000000e+00> : vector<16x128xf32>
    %3 = tpu.matmul %1, %2, %cst {dimension_numbers = #tpu.dot_dimension_numbers<[1], [0], [0], [1], [0, 0, 1, 1], [], []>} : vector<16x1024xbf16>, vector<1024x128xbf16>, vector<16x128xf32> -> vector<16x128xf32>
    %c0_3 = arith.constant 0 : index
    %c0_4 = arith.constant 0 : index
    %4 = vector.load %arg2[%c0_3, %c0_4] : memref<3x128xf32, #tpu.memory_space<vmem>>, vector<1x128xf32>
    %5 = vector.broadcast %4 : vector<1x128xf32> to vector<16x128xf32>
    %6 = arith.addf %3, %5 : vector<16x128xf32>
    %7 = math.tanh %6 : vector<16x128xf32>
    %8 = arith.truncf %7 : vector<16x128xf32> to vector<16x128xbf16>
    %c0_5 = arith.constant 0 : index
    %c0_6 = arith.constant 0 : index
    %9 = vector.load %arg4[%c0_5, %c0_6] : memref<128x128xbf16, #tpu.memory_space<vmem>>, vector<128x128xbf16>
    %cst_7 = arith.constant dense<0.000000e+00> : vector<16x128xf32>
    %10 = tpu.matmul %8, %9, %cst_7 {dimension_numbers = #tpu.dot_dimension_numbers<[1], [0], [0], [1], [0, 0, 1, 1], [], []>} : vector<16x128xbf16>, vector<128x128xbf16>, vector<16x128xf32> -> vector<16x128xf32>
    %c1 = arith.constant 1 : index
    %c0_8 = arith.constant 0 : index
    %11 = vector.load %arg2[%c1, %c0_8] : memref<3x128xf32, #tpu.memory_space<vmem>>, vector<1x128xf32>
    %12 = vector.broadcast %11 : vector<1x128xf32> to vector<16x128xf32>
    %13 = arith.addf %10, %12 : vector<16x128xf32>
    %14 = math.tanh %13 : vector<16x128xf32>
    %15 = arith.truncf %14 : vector<16x128xf32> to vector<16x128xbf16>
    %c0_9 = arith.constant 0 : index
    %c0_10 = arith.constant 0 : index
    %16 = vector.load %arg5[%c0_9, %c0_10] : memref<128x128xbf16, #tpu.memory_space<vmem>>, vector<128x128xbf16>
    %cst_11 = arith.constant dense<0.000000e+00> : vector<16x128xf32>
    %17 = tpu.matmul %15, %16, %cst_11 {dimension_numbers = #tpu.dot_dimension_numbers<[1], [0], [0], [1], [0, 0, 1, 1], [], []>} : vector<16x128xbf16>, vector<128x128xbf16>, vector<16x128xf32> -> vector<16x128xf32>
    %c2 = arith.constant 2 : index
    %c0_12 = arith.constant 0 : index
    %18 = vector.load %arg2[%c2, %c0_12] : memref<3x128xf32, #tpu.memory_space<vmem>>, vector<1x128xf32>
    %19 = vector.broadcast %18 : vector<1x128xf32> to vector<16x128xf32>
    %20 = arith.addf %17, %19 : vector<16x128xf32>
    %c0_13 = arith.constant 0 : index
    %c0_14 = arith.constant 0 : index
    %21 = vector.load %arg6[%c0_13, %c0_14] : memref<16x128xf32, #tpu.memory_space<vmem>>, vector<16x128xf32>
    tpu.vector_store %arg6[%c0_13, %c0_14], %20 {strides = array<i32>} : memref<16x128xf32, #tpu.memory_space<vmem>>, vector<16x128xf32>,
    return
  }
  func.func @transform_0(%arg0: i32) -> (i32, i32) {
    %c0_i32 = arith.constant 0 : i32
    %c0_i32_0 = arith.constant 0 : i32
    return %arg0, %c0_i32 : i32, i32
  }
  func.func @transform_1(%arg0: i32) -> (i32, i32) {
    %c0_i32 = arith.constant 0 : i32
    %c0_i32_0 = arith.constant 0 : i32
    %c0_i32_1 = arith.constant 0 : i32
    return %c0_i32, %c0_i32_0 : i32, i32
  }
  func.func @transform_2(%arg0: i32) -> (i32, i32) {
    %c0_i32 = arith.constant 0 : i32
    %c0_i32_0 = arith.constant 0 : i32
    %c0_i32_1 = arith.constant 0 : i32
    return %c0_i32, %c0_i32_0 : i32, i32
  }
  func.func @transform_3(%arg0: i32) -> (i32, i32) {
    %c0_i32 = arith.constant 0 : i32
    %c0_i32_0 = arith.constant 0 : i32
    %c0_i32_1 = arith.constant 0 : i32
    return %c0_i32, %c0_i32_0 : i32, i32
  }
  func.func @transform_4(%arg0: i32) -> (i32, i32) {
    %c0_i32 = arith.constant 0 : i32
    %c0_i32_0 = arith.constant 0 : i32
    %c0_i32_1 = arith.constant 0 : i32
    return %c0_i32, %c0_i32_0 : i32, i32
  }
  func.func @transform_5(%arg0: i32) -> (i32, i32) {
    %c0_i32 = arith.constant 0 : i32
    %c0_i32_0 = arith.constant 0 : i32
    return %arg0, %c0_i32 : i32, i32
  }
}

module attributes {stable_mosaic.version = 11 : i64} {
  func.func @_mlp_kernel(%arg0: i32, %arg1: memref<16x1024xf32, #tpu.memory_space<vmem>>, %arg2: memref<3x128xf32, #tpu.memory_space<vmem>>, %arg3: memref<1024x128xbf16, #tpu.memory_space<vmem>>, %arg4: memref<128x128xbf16, #tpu.memory_space<vmem>>, %arg5: memref<128x128xbf16, #tpu.memory_space<vmem>>, %arg6: memref<16x128xf32, #tpu.memory_space<vmem>>) attributes {dimension_semantics = [#tpu.dimension_semantics<parallel>], iteration_bounds = array<i64: 1>, scalar_prefetch = 0 : i64, scratch_operands = 0 : i64, tpu.core_type = #tpu.core_type<tc>, window_params = [{transform_indices = @transform_0, window_bounds = array<i64: 16, 1024>}, {pipeline_mode = #tpu.pipeline_mode<synchronous>, transform_indices = @transform_1, window_bounds = array<i64: 3, 128>}, {pipeline_mode = #tpu.pipeline_mode<synchronous>, transform_indices = @transform_2, window_bounds = array<i64: 1024, 128>}, {pipeline_mode = #tpu.pipeline_mode<synchronous>, transform_indices = @transform_3, window_bounds = array<i64: 128, 128>}, {pipeline_mode = #tpu.pipeline_mode<synchronous>, transform_indices = @transform_4, window_bounds = array<i64: 128, 128>}, {transform_indices = @transform_5, window_bounds = array<i64: 16, 128>}]} {
    %c0 = arith.constant 0 : index
    %c0_0 = arith.constant 0 : index
    %0 = vector.load %arg1[%c0, %c0_0] : memref<16x1024xf32, #tpu.memory_space<vmem>>, vector<16x1024xf32>
    %1 = arith.truncf %0 : vector<16x1024xf32> to vector<16x1024xbf16>
    %c0_1 = arith.constant 0 : index
    %c0_2 = arith.constant 0 : index
    %2 = vector.load %arg3[%c0_1, %c0_2] : memref<1024x128xbf16, #tpu.memory_space<vmem>>, vector<1024x128xbf16>
    %cst = arith.constant dense<0.000000e+00> : vector<16x128xf32>
    %3 = tpu.matmul %1, %2, %cst {dimension_numbers = #tpu.dot_dimension_numbers<[1], [0], [0], [1], [0, 0, 1, 1], [], []>} : vector<16x1024xbf16>, vector<1024x128xbf16>, vector<16x128xf32> -> vector<16x128xf32>
    %c0_3 = arith.constant 0 : index
    %c0_4 = arith.constant 0 : index
    %4 = vector.load %arg2[%c0_3, %c0_4] : memref<3x128xf32, #tpu.memory_space<vmem>>, vector<1x128xf32>
    %5 = vector.broadcast %4 : vector<1x128xf32> to vector<16x128xf32>
    %6 = arith.addf %3, %5 : vector<16x128xf32>
    %7 = math.tanh %6 : vector<16x128xf32>
    %8 = arith.truncf %7 : vector<16x128xf32> to vector<16x128xbf16>
    %c0_5 = arith.constant 0 : index
    %c0_6 = arith.constant 0 : index
    %9 = vector.load %arg4[%c0_5, %c0_6] : memref<128x128xbf16, #tpu.memory_space<vmem>>, vector<128x128xbf16>
    %cst_7 = arith.constant dense<0.000000e+00> : vector<16x128xf32>
    %10 = tpu.matmul %8, %9, %cst_7 {dimension_numbers = #tpu.dot_dimension_numbers<[1], [0], [0], [1], [0, 0, 1, 1], [], []>} : vector<16x128xbf16>, vector<128x128xbf16>, vector<16x128xf32> -> vector<16x128xf32>
    %c1 = arith.constant 1 : index
    %c0_8 = arith.constant 0 : index
    %11 = vector.load %arg2[%c1, %c0_8] : memref<3x128xf32, #tpu.memory_space<vmem>>, vector<1x128xf32>
    %12 = vector.broadcast %11 : vector<1x128xf32> to vector<16x128xf32>
    %13 = arith.addf %10, %12 : vector<16x128xf32>
    %14 = math.tanh %13 : vector<16x128xf32>
    %15 = arith.truncf %14 : vector<16x128xf32> to vector<16x128xbf16>
    %c0_9 = arith.constant 0 : index
    %c0_10 = arith.constant 0 : index
    %16 = vector.load %arg5[%c0_9, %c0_10] : memref<128x128xbf16, #tpu.memory_space<vmem>>, vector<128x128xbf16>
    %cst_11 = arith.constant dense<0.000000e+00> : vector<16x128xf32>
    %17 = tpu.matmul %15, %16, %cst_11 {dimension_numbers = #tpu.dot_dimension_numbers<[1], [0], [0], [1], [0, 0, 1, 1], [], []>} : vector<16x128xbf16>, vector<128x128xbf16>, vector<16x128xf32> -> vector<16x128xf32>
    %c2 = arith.constant 2 : index
    %c0_12 = arith.constant 0 : index
    %18 = vector.load %arg2[%c2, %c0_12] : memref<3x128xf32, #tpu.memory_space<vmem>>, vector<1x128xf32>
    %19 = vector.broadcast %18 : vector<1x128xf32> to vector<16x128xf32>
    %20 = arith.addf %17, %19 : vector<16x128xf32>
    %c0_13 = arith.constant 0 : index
    %c0_14 = arith.constant 0 : index
    %21 = vector.load %arg6[%c0_13, %c0_14] : memref<16x128xf32, #tpu.memory_space<vmem>>, vector<16x128xf32>
    tpu.vector_store %arg6[%c0_13, %c0_14], %20 {strides = array<i32>} : memref<16x128xf32, #tpu.memory_space<vmem>>, vector<16x128xf32>,
    return
  }
  func.func @transform_0(%arg0: i32) -> (i32, i32) {
    %c0_i32 = arith.constant 0 : i32
    %c0_i32_0 = arith.constant 0 : i32
    return %arg0, %c0_i32 : i32, i32
  }
  func.func @transform_1(%arg0: i32) -> (i32, i32) {
    %c0_i32 = arith.constant 0 : i32
    %c0_i32_0 = arith.constant 0 : i32
    %c0_i32_1 = arith.constant 0 : i32
    return %c0_i32, %c0_i32_0 : i32, i32
  }
  func.func @transform_2(%arg0: i32) -> (i32, i32) {
    %c0_i32 = arith.constant 0 : i32
    %c0_i32_0 = arith.constant 0 : i32
    %c0_i32_1 = arith.constant 0 : i32
    return %c0_i32, %c0_i32_0 : i32, i32
  }
  func.func @transform_3(%arg0: i32) -> (i32, i32) {
    %c0_i32 = arith.constant 0 : i32
    %c0_i32_0 = arith.constant 0 : i32
    %c0_i32_1 = arith.constant 0 : i32
    return %c0_i32, %c0_i32_0 : i32, i32
  }
  func.func @transform_4(%arg0: i32) -> (i32, i32) {
    %c0_i32 = arith.constant 0 : i32
    %c0_i32_0 = arith.constant 0 : i32
    %c0_i32_1 = arith.constant 0 : i32
    return %c0_i32, %c0_i32_0 : i32, i32
  }
  func.func @transform_5(%arg0: i32) -> (i32, i32) {
    %c0_i32 = arith.constant 0 : i32
    %c0_i32_0 = arith.constant 0 : i32
    return %arg0, %c0_i32 : i32, i32
  }
}

</mosaic_0001>

<llo_original>
// kernel: tpu_custom_call.1
$region0: #{tpu_custom_call.1}
  #allocation0 [shape = 'u32[]', space=smem, size = 0x4, offset = 0x4, fixed_abs, tag = 'smem constant byte address 0x4 - core index']
  #allocation1 [shape = 'u32[144,128]{1,0:T(1,128)}', space=vmem, size = 0x12000, scoped, tag = 'internal scratch']
  %s0 = inlined_call_operand.hbm [shape: f32[16,1024], index: 0, kind: input, shape index: {}]
  %s1 = inlined_call_operand.hbm [shape: f32[3,128], index: 1, kind: input, shape index: {}]
  %s2 = inlined_call_operand.hbm [shape: bf16[1024,128], index: 2, kind: input, shape index: {}]
  %s3 = inlined_call_operand.hbm [shape: bf16[128,128], index: 3, kind: input, shape index: {}]
  %s4 = inlined_call_operand.hbm [shape: bf16[128,128], index: 4, kind: input, shape index: {}]
  %s5 = inlined_call_operand.hbm [shape: f32[16,128], index: 5, kind: output, shape index: {}]
  %s6 = sld [smem:[#allocation0]]
  $region50: #{tpu_custom_call.1} parent=0
    _
  %s8 = ssub.s32 1, %s6
  %s9 = scalar_select 0, %s8, %s6
  $region1: #{tpu_custom_call.1} parent=0
    #allocation2 [shape = 'u8[65536]{0}', space=vmem, size = 0x10000, scoped, tag = 'input window, operand 0, single buffered']
    #allocation3 [shape = 's32[1]{0}', space=sflag, size = 0x4, scoped, tag = 'scoped memory for tpu_custom_call.1']
    #allocation4 [shape = 's32[1]{0}', space=sflag, size = 0x4, scoped, tag = 'scoped memory for tpu_custom_call.1']
    #allocation5 [shape = 'u8[2048]{0}', space=vmem, size = 0x800, scoped, tag = 'input window, operand 1, single buffered']
    #allocation6 [shape = 's32[1]{0}', space=sflag, size = 0x4, scoped, tag = 'scoped memory for tpu_custom_call.1']
    #allocation7 [shape = 'u8[262144]{0}', space=vmem, size = 0x40000, scoped, tag = 'input window, operand 2, single buffered']
    #allocation8 [shape = 'u8[32768]{0}', space=vmem, size = 0x8000, scoped, tag = 'input window, operand 3, single buffered']
    #allocation9 [shape = 's32[1]{0}', space=sflag, size = 0x4, scoped, tag = 'scoped memory for tpu_custom_call.1']
    #allocation10 [shape = 'u8[32768]{0}', space=vmem, size = 0x8000, scoped, tag = 'input window, operand 4, single buffered']
    #allocation11 [shape = 'u8[8192]{0}', space=vmem, size = 0x2000, scoped, tag = 'output window, operand 0, single buffered']
    %10 = vsyncpa [#allocation3], 0
    %11 = vsyncpa [#allocation6], 0
    %12 = vsyncpa [#allocation9], 0
    %13 = vsyncpa [#allocation4], 0
    // Predicated region
    $region2: #{tpu_custom_call.1} parent=1 // pred_check
      _
    $region3: #{tpu_custom_call.1} parent=1 // pred_check_branch
      %15 = sbr.rel (0) target = $region5
    $region4: #{tpu_custom_call.1} parent=1 // pred_region
      %s17 = ssub.s32 2048, 2048
      %18 = vsyncadd [#allocation3], %s17
      %s19 = sshll.u32 [#allocation2], 4
      %s20 = int_to_ptr.vmem [resolvable:$true] %s19
      %25 = dma.hbm_to_vmem [thread:$0]  %s0, 2048, %s20, [#allocation3], 1024, 1024, 64
    $region5: #{tpu_custom_call.1} parent=1 // pred_fallthru
      _
    // Predicated region
    $region6: #{tpu_custom_call.1} parent=1 // pred_check
      _
    $region7: #{tpu_custom_call.1} parent=1 // pred_check_branch
      %27 = sbr.rel (0) target = $region9
    $region8: #{tpu_custom_call.1} parent=1 // pred_region
      %s29 = ssub.s32 64, 64
      %30 = vsyncadd [#allocation6], %s29
      %s32 = sshll.u32 [#allocation5], 4
      %s33 = int_to_ptr.vmem [resolvable:$true] %s32
      %35 = dma.hbm_to_vmem [thread:$0]  %s1, 64, %s33, [#allocation6]
    $region9: #{tpu_custom_call.1} parent=1 // pred_fallthru
      _
    // Predicated region
    $region10: #{tpu_custom_call.1} parent=1 // pred_check
      _
    $region11: #{tpu_custom_call.1} parent=1 // pred_check_branch
      %37 = sbr.rel (0) target = $region13
    $region12: #{tpu_custom_call.1} parent=1 // pred_region
      %s39 = ssub.s32 8192, 8192
      %40 = vsyncadd [#allocation6], %s39
      %s41 = sshll.u32 [#allocation7], 4
      %s42 = int_to_ptr.vmem [resolvable:$true] %s41
      %47 = dma.hbm_to_vmem [thread:$0]  %s2, 8192, %s42, [#allocation6], 64, 64, 4
    $region13: #{tpu_custom_call.1} parent=1 // pred_fallthru
      _
    // Predicated region
    $region14: #{tpu_custom_call.1} parent=1 // pred_check
      _
    $region15: #{tpu_custom_call.1} parent=1 // pred_check_branch
      %49 = sbr.rel (0) target = $region17
    $region16: #{tpu_custom_call.1} parent=1 // pred_region
      %s51 = ssub.s32 1024, 1024
      %52 = vsyncadd [#allocation9], %s51
      %s53 = sshll.u32 [#allocation8], 4
      %s54 = int_to_ptr.vmem [resolvable:$true] %s53
      %59 = dma.hbm_to_vmem [thread:$0]  %s3, 1024, %s54, [#allocation9], 64, 64, 4
    $region17: #{tpu_custom_call.1} parent=1 // pred_fallthru
      _
    // Predicated region
    $region18: #{tpu_custom_call.1} parent=1 // pred_check
      _
    $region19: #{tpu_custom_call.1} parent=1 // pred_check_branch
      %61 = sbr.rel (0) target = $region21
    $region20: #{tpu_custom_call.1} parent=1 // pred_region
      %s63 = ssub.s32 1024, 1024
      %64 = vsyncadd [#allocation9], %s63
      %s65 = sshll.u32 [#allocation10], 4
      %s66 = int_to_ptr.vmem [resolvable:$true] %s65
      %71 = dma.hbm_to_vmem [thread:$0]  %s4, 1024, %s66, [#allocation9], 64, 64, 4
    $region21: #{tpu_custom_call.1} parent=1 // pred_fallthru
      _
    // Predicated region
    $region22: #{tpu_custom_call.1} parent=1 // pred_check
      _
    $region23: #{tpu_custom_call.1} parent=1 // pred_check_branch
      %73 = sbr.rel (0) target = $region25
    $region24: #{tpu_custom_call.1} parent=1 // pred_region
      %74 = dma.done [#allocation3], 2048
    $region25: #{tpu_custom_call.1} parent=1 // pred_fallthru
      _
    // Predicated region
    $region26: #{tpu_custom_call.1} parent=1 // pred_check
      _
    $region27: #{tpu_custom_call.1} parent=1 // pred_check_branch
      %76 = sbr.rel (0) target = $region29
    $region28: #{tpu_custom_call.1} parent=1 // pred_region
      %77 = dma.done [#allocation6], 64
    $region29: #{tpu_custom_call.1} parent=1 // pred_fallthru
      _
    // Predicated region
    $region30: #{tpu_custom_call.1} parent=1 // pred_check
      _
    $region31: #{tpu_custom_call.1} parent=1 // pred_check_branch
      %79 = sbr.rel (0) target = $region33
    $region32: #{tpu_custom_call.1} parent=1 // pred_region
      %80 = dma.done [#allocation6], 8192
    $region33: #{tpu_custom_call.1} parent=1 // pred_fallthru
      _
    // Predicated region
    $region34: #{tpu_custom_call.1} parent=1 // pred_check
      _
    $region35: #{tpu_custom_call.1} parent=1 // pred_check_branch
      %82 = sbr.rel (0) target = $region37
    $region36: #{tpu_custom_call.1} parent=1 // pred_region
      %83 = dma.done [#allocation9], 1024
    $region37: #{tpu_custom_call.1} parent=1 // pred_fallthru
      _
    // Predicated region
    $region38: #{tpu_custom_call.1} parent=1 // pred_check
      _
    $region39: #{tpu_custom_call.1} parent=1 // pred_check_branch
      %85 = sbr.rel (0) target = $region41
    $region40: #{tpu_custom_call.1} parent=1 // pred_region
      %86 = dma.done [#allocation9], 1024
    $region41: #{tpu_custom_call.1} parent=1 // pred_fallthru
      _
    %v88 = vld [vmem:[#allocation2] sm:$0xff]
    %v89 = vld [vmem:[#allocation2 + $0x8] sm:$0xff]
    %v90 = vld [vmem:[#allocation2 + $0x10] sm:$0xff]
    %v91 = vld [vmem:[#allocation2 + $0x18] sm:$0xff]
    %v92 = vld [vmem:[#allocation2 + $0x20] sm:$0xff]
    %v93 = vld [vmem:[#allocation2 + $0x28] sm:$0xff]
    %v94 = vld [vmem:[#allocation2 + $0x30] sm:$0xff]
    %v95 = vld [vmem:[#allocation2 + $0x38] sm:$0xff]
    %v96 = vld [vmem:[#allocation2 + $0x40] sm:$0xff]
    %v97 = vld [vmem:[#allocation2 + $0x48] sm:$0xff]
    %v98 = vld [vmem:[#allocation2 + $0x50] sm:$0xff]
    %v99 = vld [vmem:[#allocation2 + $0x58] sm:$0xff]
    %v100 = vld [vmem:[#allocation2 + $0x60] sm:$0xff]
    %v101 = vld [vmem:[#allocation2 + $0x68] sm:$0xff]
    %v102 = vld [vmem:[#allocation2 + $0x70] sm:$0xff]
    %v103 = vld [vmem:[#allocation2 + $0x78] sm:$0xff]
    %v104 = vpack.c.bf16 %v96, %v88
    %v105 = vpack.c.bf16 %v97, %v89
    %v106 = vpack.c.bf16 %v98, %v90
    %v107 = vpack.c.bf16 %v99, %v91
    %v108 = vpack.c.bf16 %v100, %v92
    %v109 = vpack.c.bf16 %v101, %v93
    %v110 = vpack.c.bf16 %v102, %v94
    %v111 = vpack.c.bf16 %v103, %v95
    %v112 = vld [vmem:[#allocation7] sm:$0xf]
    %v113 = vld [vmem:[#allocation7 + $0x4] sm:$0xf]
    %v114 = vld [vmem:[#allocation7 + $0x8] sm:$0xf]
    %v115 = vld [vmem:[#allocation7 + $0xc] sm:$0xf]
    %v116 = vld [vmem:[#allocation7 + $0x10] sm:$0xf]
    %v117 = vld [vmem:[#allocation7 + $0x14] sm:$0xf]
    %v118 = vld [vmem:[#allocation7 + $0x18] sm:$0xf]
    %v119 = vld [vmem:[#allocation7 + $0x1c] sm:$0xf]
    %v120 = vld [vmem:[#allocation7 + $0x20] sm:$0xf]
    %v121 = vld [vmem:[#allocation7 + $0x24] sm:$0xf]
    %v122 = vld [vmem:[#allocation7 + $0x28] sm:$0xf]
    %v123 = vld [vmem:[#allocation7 + $0x2c] sm:$0xf]
    %v124 = vld [vmem:[#allocation7 + $0x30] sm:$0xf]
    %v125 = vld [vmem:[#allocation7 + $0x34] sm:$0xf]
    %v126 = vld [vmem:[#allocation7 + $0x38] sm:$0xf]
    %v127 = vld [vmem:[#allocation7 + $0x3c] sm:$0xf]
    %v128 = vld [vmem:[#allocation7 + $0x40] sm:$0xf]
    %v129 = vld [vmem:[#allocation7 + $0x44] sm:$0xf]
    %v130 = vld [vmem:[#allocation7 + $0x48] sm:$0xf]
    %v131 = vld [vmem:[#allocation7 + $0x4c] sm:$0xf]
    %v132 = vld [vmem:[#allocation7 + $0x50] sm:$0xf]
    %v133 = vld [vmem:[#allocation7 + $0x54] sm:$0xf]
    %v134 = vld [vmem:[#allocation7 + $0x58] sm:$0xf]
    %v135 = vld [vmem:[#allocation7 + $0x5c] sm:$0xf]
    %v136 = vld [vmem:[#allocation7 + $0x60] sm:$0xf]
    %v137 = vld [vmem:[#allocation7 + $0x64] sm:$0xf]
    %v138 = vld [vmem:[#allocation7 + $0x68] sm:$0xf]
    %v139 = vld [vmem:[#allocation7 + $0x6c] sm:$0xf]
    %v140 = vld [vmem:[#allocation7 + $0x70] sm:$0xf]
    %v141 = vld [vmem:[#allocation7 + $0x74] sm:$0xf]
    %v142 = vld [vmem:[#allocation7 + $0x78] sm:$0xf]
    %v143 = vld [vmem:[#allocation7 + $0x7c] sm:$0xf]
    %v144 = vld [vmem:[#allocation7 + $0x80] sm:$0xf]
    %v145 = vld [vmem:[#allocation7 + $0x84] sm:$0xf]
    %v146 = vld [vmem:[#allocation7 + $0x88] sm:$0xf]
    %v147 = vld [vmem:[#allocation7 + $0x8c] sm:$0xf]
    %v148 = vld [vmem:[#allocation7 + $0x90] sm:$0xf]
    %v149 = vld [vmem:[#allocation7 + $0x94] sm:$0xf]
    %v150 = vld [vmem:[#allocation7 + $0x98] sm:$0xf]
    %v151 = vld [vmem:[#allocation7 + $0x9c] sm:$0xf]
    %v152 = vld [vmem:[#allocation7 + $0xa0] sm:$0xf]
    %v153 = vld [vmem:[#allocation7 + $0xa4] sm:$0xf]
    %v154 = vld [vmem:[#allocation7 + $0xa8] sm:$0xf]
    %v155 = vld [vmem:[#allocation7 + $0xac] sm:$0xf]
    %v156 = vld [vmem:[#allocation7 + $0xb0] sm:$0xf]
    %v157 = vld [vmem:[#allocation7 + $0xb4] sm:$0xf]
    %v158 = vld [vmem:[#allocation7 + $0xb8] sm:$0xf]
    %v159 = vld [vmem:[#allocation7 + $0xbc] sm:$0xf]
    %v160 = vld [vmem:[#allocation7 + $0xc0] sm:$0xf]
    %v161 = vld [vmem:[#allocation7 + $0xc4] sm:$0xf]
    %v162 = vld [vmem:[#allocation7 + $0xc8] sm:$0xf]
    %v163 = vld [vmem:[#allocation7 + $0xcc] sm:$0xf]
    %v164 = vld [vmem:[#allocation7 + $0xd0] sm:$0xf]
    %v165 = vld [vmem:[#allocation7 + $0xd4] sm:$0xf]
    %v166 = vld [vmem:[#allocation7 + $0xd8] sm:$0xf]
    %v167 = vld [vmem:[#allocation7 + $0xdc] sm:$0xf]
    %v168 = vld [vmem:[#allocation7 + $0xe0] sm:$0xf]
    %v169 = vld [vmem:[#allocation7 + $0xe4] sm:$0xf]
    %v170 = vld [vmem:[#allocation7 + $0xe8] sm:$0xf]
    %v171 = vld [vmem:[#allocation7 + $0xec] sm:$0xf]
    %v172 = vld [vmem:[#allocation7 + $0xf0] sm:$0xf]
    %v173 = vld [vmem:[#allocation7 + $0xf4] sm:$0xf]
    %v174 = vld [vmem:[#allocation7 + $0xf8] sm:$0xf]
    %v175 = vld [vmem:[#allocation7 + $0xfc] sm:$0xf]
    %v176 = vld [vmem:[#allocation7 + $0x100] sm:$0xf]
    %v177 = vld [vmem:[#allocation7 + $0x104] sm:$0xf]
    %v178 = vld [vmem:[#allocation7 + $0x108] sm:$0xf]
    %v179 = vld [vmem:[#allocation7 + $0x10c] sm:$0xf]
    %v180 = vld [vmem:[#allocation7 + $0x110] sm:$0xf]
    %v181 = vld [vmem:[#allocation7 + $0x114] sm:$0xf]
    %v182 = vld [vmem:[#allocation7 + $0x118] sm:$0xf]
    %v183 = vld [vmem:[#allocation7 + $0x11c] sm:$0xf]
    %v184 = vld [vmem:[#allocation7 + $0x120] sm:$0xf]
    %v185 = vld [vmem:[#allocation7 + $0x124] sm:$0xf]
    %v186 = vld [vmem:[#allocation7 + $0x128] sm:$0xf]
    %v187 = vld [vmem:[#allocation7 + $0x12c] sm:$0xf]
    %v188 = vld [vmem:[#allocation7 + $0x130] sm:$0xf]
    %v189 = vld [vmem:[#allocation7 + $0x134] sm:$0xf]
    %v190 = vld [vmem:[#allocation7 + $0x138] sm:$0xf]
    %v191 = vld [vmem:[#allocation7 + $0x13c] sm:$0xf]
    %v192 = vld [vmem:[#allocation7 + $0x140] sm:$0xf]
    %v193 = vld [vmem:[#allocation7 + $0x144] sm:$0xf]
    %v194 = vld [vmem:[#allocation7 + $0x148] sm:$0xf]
    %v195 = vld [vmem:[#allocation7 + $0x14c] sm:$0xf]
    %v196 = vld [vmem:[#allocation7 + $0x150] sm:$0xf]
    %v197 = vld [vmem:[#allocation7 + $0x154] sm:$0xf]
    %v198 = vld [vmem:[#allocation7 + $0x158] sm:$0xf]
    %v199 = vld [vmem:[#allocation7 + $0x15c] sm:$0xf]
    %v200 = vld [vmem:[#allocation7 + $0x160] sm:$0xf]
    %v201 = vld [vmem:[#allocation7 + $0x164] sm:$0xf]
    %v202 = vld [vmem:[#allocation7 + $0x168] sm:$0xf]
    %v203 = vld [vmem:[#allocation7 + $0x16c] sm:$0xf]
    %v204 = vld [vmem:[#allocation7 + $0x170] sm:$0xf]
    %v205 = vld [vmem:[#allocation7 + $0x174] sm:$0xf]
    %v206 = vld [vmem:[#allocation7 + $0x178] sm:$0xf]
    %v207 = vld [vmem:[#allocation7 + $0x17c] sm:$0xf]
    %v208 = vld [vmem:[#allocation7 + $0x180] sm:$0xf]
    %v209 = vld [vmem:[#allocation7 + $0x184] sm:$0xf]
    %v210 = vld [vmem:[#allocation7 + $0x188] sm:$0xf]
    %v211 = vld [vmem:[#allocation7 + $0x18c] sm:$0xf]
    %v212 = vld [vmem:[#allocation7 + $0x190] sm:$0xf]
    %v213 = vld [vmem:[#allocation7 + $0x194] sm:$0xf]
    %v214 = vld [vmem:[#allocation7 + $0x198] sm:$0xf]
    %v215 = vld [vmem:[#allocation7 + $0x19c] sm:$0xf]
    %v216 = vld [vmem:[#allocation7 + $0x1a0] sm:$0xf]
    %v217 = vld [vmem:[#allocation7 + $0x1a4] sm:$0xf]
    %v218 = vld [vmem:[#allocation7 + $0x1a8] sm:$0xf]
    %v219 = vld [vmem:[#allocation7 + $0x1ac] sm:$0xf]
    %v220 = vld [vmem:[#allocation7 + $0x1b0] sm:$0xf]
    %v221 = vld [vmem:[#allocation7 + $0x1b4] sm:$0xf]
    %v222 = vld [vmem:[#allocation7 + $0x1b8] sm:$0xf]
    %v223 = vld [vmem:[#allocation7 + $0x1bc] sm:$0xf]
    %v224 = vld [vmem:[#allocation7 + $0x1c0] sm:$0xf]
    %v225 = vld [vmem:[#allocation7 + $0x1c4] sm:$0xf]
    %v226 = vld [vmem:[#allocation7 + $0x1c8] sm:$0xf]
    %v227 = vld [vmem:[#allocation7 + $0x1cc] sm:$0xf]
    %v228 = vld [vmem:[#allocation7 + $0x1d0] sm:$0xf]
    %v229 = vld [vmem:[#allocation7 + $0x1d4] sm:$0xf]
    %v230 = vld [vmem:[#allocation7 + $0x1d8] sm:$0xf]
    %v231 = vld [vmem:[#allocation7 + $0x1dc] sm:$0xf]
    %v232 = vld [vmem:[#allocation7 + $0x1e0] sm:$0xf]
    %v233 = vld [vmem:[#allocation7 + $0x1e4] sm:$0xf]
    %v234 = vld [vmem:[#allocation7 + $0x1e8] sm:$0xf]
    %v235 = vld [vmem:[#allocation7 + $0x1ec] sm:$0xf]
    %v236 = vld [vmem:[#allocation7 + $0x1f0] sm:$0xf]
    %v237 = vld [vmem:[#allocation7 + $0x1f4] sm:$0xf]
    %v238 = vld [vmem:[#allocation7 + $0x1f8] sm:$0xf]
    %v239 = vld [vmem:[#allocation7 + $0x1fc] sm:$0xf]
    %v240 = vld [vmem:[#allocation5] sm:$0x1]
    %v241 = vlaneseq
    %v242 = vshrl.u32 %v241, 7
    %v243 = vsub.s32 0, %v242
    %v244 = vrot.slane %v240, %v243
    %v373 = vunpack.c.l.b16 %v112
    %v374 = vunpack.c.l.b16 %v113
    %v375 = vunpack.c.l.b16 %v114
    %v376 = vunpack.c.l.b16 %v115
    %v377 = vunpack.c.l.b16 %v116
    %v378 = vunpack.c.l.b16 %v117
    %v379 = vunpack.c.l.b16 %v118
    %v380 = vunpack.c.l.b16 %v119
    %v381 = vunpack.c.l.b16 %v120
    %v382 = vunpack.c.l.b16 %v121
    %v383 = vunpack.c.l.b16 %v122
    %v384 = vunpack.c.l.b16 %v123
    %v385 = vunpack.c.l.b16 %v124
    %v386 = vunpack.c.l.b16 %v125
    %v387 = vunpack.c.l.b16 %v126
    %v388 = vunpack.c.l.b16 %v127
    %v389 = vunpack.c.l.b16 %v128
    %v390 = vunpack.c.l.b16 %v129
    %v391 = vunpack.c.l.b16 %v130
    %v392 = vunpack.c.l.b16 %v131
    %v393 = vunpack.c.l.b16 %v132
    %v394 = vunpack.c.l.b16 %v133
    %v395 = vunpack.c.l.b16 %v134
    %v396 = vunpack.c.l.b16 %v135
    %v397 = vunpack.c.l.b16 %v136
    %v398 = vunpack.c.l.b16 %v137
    %v399 = vunpack.c.l.b16 %v138
    %v400 = vunpack.c.l.b16 %v139
    %v401 = vunpack.c.l.b16 %v140
    %v402 = vunpack.c.l.b16 %v141
    %v403 = vunpack.c.l.b16 %v142
    %v404 = vunpack.c.l.b16 %v143
    %v405 = vunpack.c.l.b16 %v144
    %v406 = vunpack.c.l.b16 %v145
    %v407 = vunpack.c.l.b16 %v146
    %v408 = vunpack.c.l.b16 %v147
    %v409 = vunpack.c.l.b16 %v148
    %v410 = vunpack.c.l.b16 %v149
    %v411 = vunpack.c.l.b16 %v150
    %v412 = vunpack.c.l.b16 %v151
    %v413 = vunpack.c.l.b16 %v152
    %v414 = vunpack.c.l.b16 %v153
    %v415 = vunpack.c.l.b16 %v154
    %v416 = vunpack.c.l.b16 %v155
    %v417 = vunpack.c.l.b16 %v156
    %v418 = vunpack.c.l.b16 %v157
    %v419 = vunpack.c.l.b16 %v158
    %v420 = vunpack.c.l.b16 %v159
    %v421 = vunpack.c.l.b16 %v160
    %v422 = vunpack.c.l.b16 %v161
    %v423 = vunpack.c.l.b16 %v162
    %v424 = vunpack.c.l.b16 %v163
    %v425 = vunpack.c.l.b16 %v164
    %v426 = vunpack.c.l.b16 %v165
    %v427 = vunpack.c.l.b16 %v166
    %v428 = vunpack.c.l.b16 %v167
    %v429 = vunpack.c.l.b16 %v168
    %v430 = vunpack.c.l.b16 %v169
    %v431 = vunpack.c.l.b16 %v170
    %v432 = vunpack.c.l.b16 %v171
    %v433 = vunpack.c.l.b16 %v172
    %v434 = vunpack.c.l.b16 %v173
    %v435 = vunpack.c.l.b16 %v174
    %v436 = vunpack.c.l.b16 %v175
    %v437 = vunpack.c.l.b16 %v176
    %v438 = vunpack.c.l.b16 %v177
    %v439 = vunpack.c.l.b16 %v178
    %v440 = vunpack.c.l.b16 %v179
    %v441 = vunpack.c.l.b16 %v180
    %v442 = vunpack.c.l.b16 %v181
    %v443 = vunpack.c.l.b16 %v182
    %v444 = vunpack.c.l.b16 %v183
    %v445 = vunpack.c.l.b16 %v184
    %v446 = vunpack.c.l.b16 %v185
    %v447 = vunpack.c.l.b16 %v186
    %v448 = vunpack.c.l.b16 %v187
    %v449 = vunpack.c.l.b16 %v188
    %v450 = vunpack.c.l.b16 %v189
    %v451 = vunpack.c.l.b16 %v190
    %v452 = vunpack.c.l.b16 %v191
    %v453 = vunpack.c.l.b16 %v192
    %v454 = vunpack.c.l.b16 %v193
    %v455 = vunpack.c.l.b16 %v194
    %v456 = vunpack.c.l.b16 %v195
    %v457 = vunpack.c.l.b16 %v196
    %v458 = vunpack.c.l.b16 %v197
    %v459 = vunpack.c.l.b16 %v198
    %v460 = vunpack.c.l.b16 %v199
    %v461 = vunpack.c.l.b16 %v200
    %v462 = vunpack.c.l.b16 %v201
    %v463 = vunpack.c.l.b16 %v202
    %v464 = vunpack.c.l.b16 %v203
    %v465 = vunpack.c.l.b16 %v204
    %v466 = vunpack.c.l.b16 %v205
    %v467 = vunpack.c.l.b16 %v206
    %v468 = vunpack.c.l.b16 %v207
    %v469 = vunpack.c.l.b16 %v208
    %v470 = vunpack.c.l.b16 %v209
    %v471 = vunpack.c.l.b16 %v210
    %v472 = vunpack.c.l.b16 %v211
    %v473 = vunpack.c.l.b16 %v212
    %v474 = vunpack.c.l.b16 %v213
    %v475 = vunpack.c.l.b16 %v214
    %v476 = vunpack.c.l.b16 %v215
    %v477 = vunpack.c.l.b16 %v216
    %v478 = vunpack.c.l.b16 %v217
    %v479 = vunpack.c.l.b16 %v218
    %v480 = vunpack.c.l.b16 %v219
    %v481 = vunpack.c.l.b16 %v220
    %v482 = vunpack.c.l.b16 %v221
    %v483 = vunpack.c.l.b16 %v222
    %v484 = vunpack.c.l.b16 %v223
    %v485 = vunpack.c.l.b16 %v224
    %v486 = vunpack.c.l.b16 %v225
    %v487 = vunpack.c.l.b16 %v226
    %v488 = vunpack.c.l.b16 %v227
    %v489 = vunpack.c.l.b16 %v228
    %v490 = vunpack.c.l.b16 %v229
    %v491 = vunpack.c.l.b16 %v230
    %v492 = vunpack.c.l.b16 %v231
    %v493 = vunpack.c.l.b16 %v232
    %v494 = vunpack.c.l.b16 %v233
    %v495 = vunpack.c.l.b16 %v234
    %v496 = vunpack.c.l.b16 %v235
    %v497 = vunpack.c.l.b16 %v236
    %v498 = vunpack.c.l.b16 %v237
    %v499 = vunpack.c.l.b16 %v238
    %v500 = vunpack.c.l.b16 %v239
    %v501 = vpack.c.b16 %v374, %v373
    %v502 = vpack.c.b16 %v376, %v375
    %v503 = vpack.c.b16 %v378, %v377
    %v504 = vpack.c.b16 %v380, %v379
    %v505 = vpack.c.b16 %v382, %v381
    %v506 = vpack.c.b16 %v384, %v383
    %v507 = vpack.c.b16 %v386, %v385
    %v508 = vpack.c.b16 %v388, %v387
    %v509 = vpack.c.b16 %v390, %v389
    %v510 = vpack.c.b16 %v392, %v391
    %v511 = vpack.c.b16 %v394, %v393
    %v512 = vpack.c.b16 %v396, %v395
    %v513 = vpack.c.b16 %v398, %v397
    %v514 = vpack.c.b16 %v400, %v399
    %v515 = vpack.c.b16 %v402, %v401
    %v516 = vpack.c.b16 %v404, %v403
    %v517 = vpack.c.b16 %v406, %v405
    %v518 = vpack.c.b16 %v408, %v407
    %v519 = vpack.c.b16 %v410, %v409
    %v520 = vpack.c.b16 %v412, %v411
    %v521 = vpack.c.b16 %v414, %v413
    %v522 = vpack.c.b16 %v416, %v415
    %v523 = vpack.c.b16 %v418, %v417
    %v524 = vpack.c.b16 %v420, %v419
    %v525 = vpack.c.b16 %v422, %v421
    %v526 = vpack.c.b16 %v424, %v423
    %v527 = vpack.c.b16 %v426, %v425
    %v528 = vpack.c.b16 %v428, %v427
    %v529 = vpack.c.b16 %v430, %v429
    %v530 = vpack.c.b16 %v432, %v431
    %v531 = vpack.c.b16 %v434, %v433
    %v532 = vpack.c.b16 %v436, %v435
    %v533 = vpack.c.b16 %v438, %v437
    %v534 = vpack.c.b16 %v440, %v439
    %v535 = vpack.c.b16 %v442, %v441
    %v536 = vpack.c.b16 %v444, %v443
    %v537 = vpack.c.b16 %v446, %v445
    %v538 = vpack.c.b16 %v448, %v447
    %v539 = vpack.c.b16 %v450, %v449
    %v540 = vpack.c.b16 %v452, %v451
    %v541 = vpack.c.b16 %v454, %v453
    %v542 = vpack.c.b16 %v456, %v455
    %v543 = vpack.c.b16 %v458, %v457
    %v544 = vpack.c.b16 %v460, %v459
    %v545 = vpack.c.b16 %v462, %v461
    %v546 = vpack.c.b16 %v464, %v463
    %v547 = vpack.c.b16 %v466, %v465
    %v548 = vpack.c.b16 %v468, %v467
    %v549 = vpack.c.b16 %v470, %v469
    %v550 = vpack.c.b16 %v472, %v471
    %v551 = vpack.c.b16 %v474, %v473
    %v552 = vpack.c.b16 %v476, %v475
    %v553 = vpack.c.b16 %v478, %v477
    %v554 = vpack.c.b16 %v480, %v479
    %v555 = vpack.c.b16 %v482, %v481
    %v556 = vpack.c.b16 %v484, %v483
    %v557 = vpack.c.b16 %v486, %v485
    %v558 = vpack.c.b16 %v488, %v487
    %v559 = vpack.c.b16 %v490, %v489
    %v560 = vpack.c.b16 %v492, %v491
    %v561 = vpack.c.b16 %v494, %v493
    %v562 = vpack.c.b16 %v496, %v495
    %v563 = vpack.c.b16 %v498, %v497
    %v564 = vpack.c.b16 %v500, %v499
    %629 = vmatprep.subr.bf16.mxu0 0
    %630 = vmatpush1.bf16.msra.mxu0 %v501
    %631 = vmatprep.subr.bf16.mxu0 0
    %632 = vmatpush1.bf16.msra.mxu0 %v502
    %633 = vmatprep.subr.bf16.mxu0 0
    %634 = vmatpush1.bf16.msra.mxu0 %v503
    %635 = vmatprep.subr.bf16.mxu0 0
    %636 = vmatpush1.bf16.msra.mxu0 %v504
    %637 = vmatprep.subr.bf16.mxu0 0
    %638 = vmatpush1.bf16.msra.mxu0 %v505
    %639 = vmatprep.subr.bf16.mxu0 0
    %640 = vmatpush1.bf16.msra.mxu0 %v506
    %641 = vmatprep.subr.bf16.mxu0 0
    %642 = vmatpush1.bf16.msra.mxu0 %v507
    %643 = vmatprep.subr.bf16.mxu0 0
    %644 = vmatpush1.bf16.msra.mxu0 %v508
    %645 = vmatprep.subr.bf16.mxu0 0
    %646 = vmatpush1.bf16.msra.mxu0 %v509
    %647 = vmatprep.subr.bf16.mxu0 0
    %648 = vmatpush1.bf16.msra.mxu0 %v510
    %649 = vmatprep.subr.bf16.mxu0 0
    %650 = vmatpush1.bf16.msra.mxu0 %v511
    %651 = vmatprep.subr.bf16.mxu0 0
    %652 = vmatpush1.bf16.msra.mxu0 %v512
    %653 = vmatprep.subr.bf16.mxu0 0
    %654 = vmatpush1.bf16.msra.mxu0 %v513
    %655 = vmatprep.subr.bf16.mxu0 0
    %656 = vmatpush1.bf16.msra.mxu0 %v514
    %657 = vmatprep.subr.bf16.mxu0 0
    %658 = vmatpush1.bf16.msra.mxu0 %v515
    %659 = vmatprep.subr.bf16.mxu0 0
    %660 = vmatpush1.bf16.msra.mxu0 %v516
    %661 = vmatprep.mubr.bf16.mxu0 %v105
    %662 = vmatmul.mubr.bf16.gmra.mrb[0].mxu0 %v104
    %v663 = vpop.f32.mrb[0].mxu0
    %v664 = vadd.f32 %v244, %v663
    %v665 = vpop.f32.mrb[0].mxu0
    %v666 = vpop.f32.mrb[0].mxu0
    %v667 = vadd.f32 %v244, %v666
    %v668 = vpop.f32.mrb[0].mxu0
    %669 = vdwg.mxu0
    %670 = vmatprep.subr.bf16.mxu0 0
    %671 = vmatpush1.bf16.msra.mxu0 %v517
    %672 = vmatprep.subr.bf16.mxu0 0
    %673 = vmatpush1.bf16.msra.mxu0 %v518
    %674 = vmatprep.subr.bf16.mxu0 0
    %675 = vmatpush1.bf16.msra.mxu0 %v519
    %676 = vmatprep.subr.bf16.mxu0 0
    %677 = vmatpush1.bf16.msra.mxu0 %v520
    %678 = vmatprep.subr.bf16.mxu0 0
    %679 = vmatpush1.bf16.msra.mxu0 %v521
    %680 = vmatprep.subr.bf16.mxu0 0
    %681 = vmatpush1.bf16.msra.mxu0 %v522
    %682 = vmatprep.subr.bf16.mxu0 0
    %683 = vmatpush1.bf16.msra.mxu0 %v523
    %684 = vmatprep.subr.bf16.mxu0 0
    %685 = vmatpush1.bf16.msra.mxu0 %v524
    %686 = vmatprep.subr.bf16.mxu0 0
    %687 = vmatpush1.bf16.msra.mxu0 %v525
    %688 = vmatprep.subr.bf16.mxu0 0
    %689 = vmatpush1.bf16.msra.mxu0 %v526
    %690 = vmatprep.subr.bf16.mxu0 0
    %691 = vmatpush1.bf16.msra.mxu0 %v527
    %692 = vmatprep.subr.bf16.mxu0 0
    %693 = vmatpush1.bf16.msra.mxu0 %v528
    %694 = vmatprep.subr.bf16.mxu0 0
    %695 = vmatpush1.bf16.msra.mxu0 %v529
    %696 = vmatprep.subr.bf16.mxu0 0
    %697 = vmatpush1.bf16.msra.mxu0 %v530
    %698 = vmatprep.subr.bf16.mxu0 0
    %699 = vmatpush1.bf16.msra.mxu0 %v531
    %700 = vmatprep.subr.bf16.mxu0 0
    %701 = vmatpush1.bf16.msra.mxu0 %v532
    %702 = vmatprep.mubr.bf16.mxu0 %v107
    %703 = vmatmul.mubr.bf16.gmra.mrb[0].mxu0 %v106
    %v704 = vpop.f32.mrb[0].mxu0
    %v705 = vadd.f32 %v664, %v704
    %v706 = vpop.f32.mrb[0].mxu0
    %v707 = vpop.f32.mrb[0].mxu0
    %v708 = vadd.f32 %v667, %v707
    %v709 = vpop.f32.mrb[0].mxu0
    %710 = vdwg.mxu0
    %711 = vmatprep.subr.bf16.mxu0 0
    %712 = vmatpush1.bf16.msra.mxu0 %v533
    %713 = vmatprep.subr.bf16.mxu0 0
    %714 = vmatpush1.bf16.msra.mxu0 %v534
    %715 = vmatprep.subr.bf16.mxu0 0
    %716 = vmatpush1.bf16.msra.mxu0 %v535
    %717 = vmatprep.subr.bf16.mxu0 0
    %718 = vmatpush1.bf16.msra.mxu0 %v536
    %719 = vmatprep.subr.bf16.mxu0 0
    %720 = vmatpush1.bf16.msra.mxu0 %v537
    %721 = vmatprep.subr.bf16.mxu0 0
    %722 = vmatpush1.bf16.msra.mxu0 %v538
    %723 = vmatprep.subr.bf16.mxu0 0
    %724 = vmatpush1.bf16.msra.mxu0 %v539
    %725 = vmatprep.subr.bf16.mxu0 0
    %726 = vmatpush1.bf16.msra.mxu0 %v540
    %727 = vmatprep.subr.bf16.mxu0 0
    %728 = vmatpush1.bf16.msra.mxu0 %v541
    %729 = vmatprep.subr.bf16.mxu0 0
    %730 = vmatpush1.bf16.msra.mxu0 %v542
    %731 = vmatprep.subr.bf16.mxu0 0
    %732 = vmatpush1.bf16.msra.mxu0 %v543
    %733 = vmatprep.subr.bf16.mxu0 0
    %734 = vmatpush1.bf16.msra.mxu0 %v544
    %735 = vmatprep.subr.bf16.mxu0 0
    %736 = vmatpush1.bf16.msra.mxu0 %v545
    %737 = vmatprep.subr.bf16.mxu0 0
    %738 = vmatpush1.bf16.msra.mxu0 %v546
    %739 = vmatprep.subr.bf16.mxu0 0
    %740 = vmatpush1.bf16.msra.mxu0 %v547
    %741 = vmatprep.subr.bf16.mxu0 0
    %742 = vmatpush1.bf16.msra.mxu0 %v548
    %743 = vmatprep.mubr.bf16.mxu0 %v109
    %744 = vmatmul.mubr.bf16.gmra.mrb[0].mxu0 %v108
    %v745 = vpop.f32.mrb[0].mxu0
    %v746 = vadd.f32 %v705, %v745
    %v747 = vpop.f32.mrb[0].mxu0
    %v748 = vpop.f32.mrb[0].mxu0
    %v749 = vadd.f32 %v708, %v748
    %v750 = vpop.f32.mrb[0].mxu0
    %751 = vdwg.mxu0
    %752 = vmatprep.subr.bf16.mxu0 0
    %753 = vmatpush1.bf16.msra.mxu0 %v549
    %754 = vmatprep.subr.bf16.mxu0 0
    %755 = vmatpush1.bf16.msra.mxu0 %v550
    %756 = vmatprep.subr.bf16.mxu0 0
    %757 = vmatpush1.bf16.msra.mxu0 %v551
    %758 = vmatprep.subr.bf16.mxu0 0
    %759 = vmatpush1.bf16.msra.mxu0 %v552
    %760 = vmatprep.subr.bf16.mxu0 0
    %761 = vmatpush1.bf16.msra.mxu0 %v553
    %762 = vmatprep.subr.bf16.mxu0 0
    %763 = vmatpush1.bf16.msra.mxu0 %v554
    %764 = vmatprep.subr.bf16.mxu0 0
    %765 = vmatpush1.bf16.msra.mxu0 %v555
    %766 = vmatprep.subr.bf16.mxu0 0
    %767 = vmatpush1.bf16.msra.mxu0 %v556
    %768 = vmatprep.subr.bf16.mxu0 0
    %769 = vmatpush1.bf16.msra.mxu0 %v557
    %770 = vmatprep.subr.bf16.mxu0 0
    %771 = vmatpush1.bf16.msra.mxu0 %v558
    %772 = vmatprep.subr.bf16.mxu0 0
    %773 = vmatpush1.bf16.msra.mxu0 %v559
    %774 = vmatprep.subr.bf16.mxu0 0
    %775 = vmatpush1.bf16.msra.mxu0 %v560
    %776 = vmatprep.subr.bf16.mxu0 0
    %777 = vmatpush1.bf16.msra.mxu0 %v561
    %778 = vmatprep.subr.bf16.mxu0 0
    %779 = vmatpush1.bf16.msra.mxu0 %v562
    %780 = vmatprep.subr.bf16.mxu0 0
    %781 = vmatpush1.bf16.msra.mxu0 %v563
    %782 = vmatprep.subr.bf16.mxu0 0
    %783 = vmatpush1.bf16.msra.mxu0 %v564
    %784 = vmatprep.mubr.bf16.mxu0 %v111
    %785 = vmatmul.mubr.bf16.gmra.mrb[0].mxu0 %v110
    %v786 = vpop.f32.mrb[0].mxu0
    %v787 = vadd.f32 %v746, %v786
    %v788 = vpop.f32.mrb[0].mxu0
    %v789 = vpop.f32.mrb[0].mxu0
    %v790 = vadd.f32 %v749, %v789
    %v791 = vpop.f32.mrb[0].mxu0
    %792 = vdwg.mxu0
    %v793 = vtanh.pop %v787
    %v794 = vtanh.pop %v790
    %v795 = vpack.c.bf16 %v794, %v793
    %v796 = vld [vmem:[#allocation8] sm:$0xf]
    %v797 = vld [vmem:[#allocation8 + $0x4] sm:$0xf]
    %v798 = vld [vmem:[#allocation8 + $0x8] sm:$0xf]
    %v799 = vld [vmem:[#allocation8 + $0xc] sm:$0xf]
    %v800 = vld [vmem:[#allocation8 + $0x10] sm:$0xf]
    %v801 = vld [vmem:[#allocation8 + $0x14] sm:$0xf]
    %v802 = vld [vmem:[#allocation8 + $0x18] sm:$0xf]
    %v803 = vld [vmem:[#allocation8 + $0x1c] sm:$0xf]
    %v804 = vld [vmem:[#allocation8 + $0x20] sm:$0xf]
    %v805 = vld [vmem:[#allocation8 + $0x24] sm:$0xf]
    %v806 = vld [vmem:[#allocation8 + $0x28] sm:$0xf]
    %v807 = vld [vmem:[#allocation8 + $0x2c] sm:$0xf]
    %v808 = vld [vmem:[#allocation8 + $0x30] sm:$0xf]
    %v809 = vld [vmem:[#allocation8 + $0x34] sm:$0xf]
    %v810 = vld [vmem:[#allocation8 + $0x38] sm:$0xf]
    %v811 = vld [vmem:[#allocation8 + $0x3c] sm:$0xf]
    %v812 = vld [vmem:[#allocation5 + $0x1] sm:$0x1]
    %v813 = vlaneseq
    %v814 = vshrl.u32 %v813, 7
    %v815 = vsub.s32 0, %v814
    %v816 = vrot.slane %v812, %v815
    %v833 = vunpack.c.l.b16 %v796
    %v834 = vunpack.c.l.b16 %v797
    %v835 = vunpack.c.l.b16 %v798
    %v836 = vunpack.c.l.b16 %v799
    %v837 = vunpack.c.l.b16 %v800
    %v838 = vunpack.c.l.b16 %v801
    %v839 = vunpack.c.l.b16 %v802
    %v840 = vunpack.c.l.b16 %v803
    %v841 = vunpack.c.l.b16 %v804
    %v842 = vunpack.c.l.b16 %v805
    %v843 = vunpack.c.l.b16 %v806
    %v844 = vunpack.c.l.b16 %v807
    %v845 = vunpack.c.l.b16 %v808
    %v846 = vunpack.c.l.b16 %v809
    %v847 = vunpack.c.l.b16 %v810
    %v848 = vunpack.c.l.b16 %v811
    %v849 = vpack.c.b16 %v834, %v833
    %v850 = vpack.c.b16 %v836, %v835
    %v851 = vpack.c.b16 %v838, %v837
    %v852 = vpack.c.b16 %v840, %v839
    %v853 = vpack.c.b16 %v842, %v841
    %v854 = vpack.c.b16 %v844, %v843
    %v855 = vpack.c.b16 %v846, %v845
    %v856 = vpack.c.b16 %v848, %v847
    %865 = vmatprep.subr.bf16.mxu0 0
    %866 = vmatpush1.bf16.msra.mxu0 %v849
    %867 = vmatprep.subr.bf16.mxu0 0
    %868 = vmatpush1.bf16.msra.mxu0 %v850
    %869 = vmatprep.subr.bf16.mxu0 0
    %870 = vmatpush1.bf16.msra.mxu0 %v851
    %871 = vmatprep.subr.bf16.mxu0 0
    %872 = vmatpush1.bf16.msra.mxu0 %v852
    %873 = vmatprep.subr.bf16.mxu0 0
    %874 = vmatpush1.bf16.msra.mxu0 %v853
    %875 = vmatprep.subr.bf16.mxu0 0
    %876 = vmatpush1.bf16.msra.mxu0 %v854
    %877 = vmatprep.subr.bf16.mxu0 0
    %878 = vmatpush1.bf16.msra.mxu0 %v855
    %879 = vmatprep.subr.bf16.mxu0 0
    %880 = vmatpush1.bf16.msra.mxu0 %v856
    %881 = vmatprep.subr.bf16.mxu0 0
    %882 = vmatpush1.bf16.msra.mxu0 0
    %883 = vmatprep.subr.bf16.mxu0 0
    %884 = vmatpush1.bf16.msra.mxu0 0
    %885 = vmatprep.subr.bf16.mxu0 0
    %886 = vmatpush1.bf16.msra.mxu0 0
    %887 = vmatprep.subr.bf16.mxu0 0
    %888 = vmatpush1.bf16.msra.mxu0 0
    %889 = vmatprep.subr.bf16.mxu0 0
    %890 = vmatpush1.bf16.msra.mxu0 0
    %891 = vmatprep.subr.bf16.mxu0 0
    %892 = vmatpush1.bf16.msra.mxu0 0
    %893 = vmatprep.subr.bf16.mxu0 0
    %894 = vmatpush1.bf16.msra.mxu0 0
    %895 = vmatprep.subr.bf16.mxu0 0
    %896 = vmatpush1.bf16.msra.mxu0 0
    %897 = vmatprep.mubr.bf16.mxu0 0
    %898 = vmatmul.mubr.bf16.gmra.mrb[0].mxu0 %v795
    %v899 = vpop.f32.mrb[0].mxu0
    %v900 = vadd.f32 %v816, %v899
    %v901 = vpop.f32.mrb[0].mxu0
    %v902 = vpop.f32.mrb[0].mxu0
    %v903 = vadd.f32 %v816, %v902
    %v904 = vpop.f32.mrb[0].mxu0
    %905 = vdwg.mxu0
    %v906 = vtanh.pop %v900
    %v907 = vtanh.pop %v903
    %v908 = vpack.c.bf16 %v907, %v906
    %v909 = vld [vmem:[#allocation10] sm:$0xf]
    %v910 = vld [vmem:[#allocation10 + $0x4] sm:$0xf]
    %v911 = vld [vmem:[#allocation10 + $0x8] sm:$0xf]
    %v912 = vld [vmem:[#allocation10 + $0xc] sm:$0xf]
    %v913 = vld [vmem:[#allocation10 + $0x10] sm:$0xf]
    %v914 = vld [vmem:[#allocation10 + $0x14] sm:$0xf]
    %v915 = vld [vmem:[#allocation10 + $0x18] sm:$0xf]
    %v916 = vld [vmem:[#allocation10 + $0x1c] sm:$0xf]
    %v917 = vld [vmem:[#allocation10 + $0x20] sm:$0xf]
    %v918 = vld [vmem:[#allocation10 + $0x24] sm:$0xf]
    %v919 = vld [vmem:[#allocation10 + $0x28] sm:$0xf]
    %v920 = vld [vmem:[#allocation10 + $0x2c] sm:$0xf]
    %v921 = vld [vmem:[#allocation10 + $0x30] sm:$0xf]
    %v922 = vld [vmem:[#allocation10 + $0x34] sm:$0xf]
    %v923 = vld [vmem:[#allocation10 + $0x38] sm:$0xf]
    %v924 = vld [vmem:[#allocation10 + $0x3c] sm:$0xf]
    %v925 = vld [vmem:[#allocation5 + $0x2] sm:$0x1]
    %v926 = vlaneseq
    %v927 = vshrl.u32 %v926, 7
    %v928 = vsub.s32 0, %v927
    %v929 = vrot.slane %v925, %v928
    %v946 = vunpack.c.l.b16 %v909
    %v947 = vunpack.c.l.b16 %v910
    %v948 = vunpack.c.l.b16 %v911
    %v949 = vunpack.c.l.b16 %v912
    %v950 = vunpack.c.l.b16 %v913
    %v951 = vunpack.c.l.b16 %v914
    %v952 = vunpack.c.l.b16 %v915
    %v953 = vunpack.c.l.b16 %v916
    %v954 = vunpack.c.l.b16 %v917
    %v955 = vunpack.c.l.b16 %v918
    %v956 = vunpack.c.l.b16 %v919
    %v957 = vunpack.c.l.b16 %v920
    %v958 = vunpack.c.l.b16 %v921
    %v959 = vunpack.c.l.b16 %v922
    %v960 = vunpack.c.l.b16 %v923
    %v961 = vunpack.c.l.b16 %v924
    %v962 = vpack.c.b16 %v947, %v946
    %v963 = vpack.c.b16 %v949, %v948
    %v964 = vpack.c.b16 %v951, %v950
    %v965 = vpack.c.b16 %v953, %v952
    %v966 = vpack.c.b16 %v955, %v954
    %v967 = vpack.c.b16 %v957, %v956
    %v968 = vpack.c.b16 %v959, %v958
    %v969 = vpack.c.b16 %v961, %v960
    %978 = vmatprep.subr.bf16.mxu0 0
    %979 = vmatpush1.bf16.msra.mxu0 %v962
    %980 = vmatprep.subr.bf16.mxu0 0
    %981 = vmatpush1.bf16.msra.mxu0 %v963
    %982 = vmatprep.subr.bf16.mxu0 0
    %983 = vmatpush1.bf16.msra.mxu0 %v964
    %984 = vmatprep.subr.bf16.mxu0 0
    %985 = vmatpush1.bf16.msra.mxu0 %v965
    %986 = vmatprep.subr.bf16.mxu0 0
    %987 = vmatpush1.bf16.msra.mxu0 %v966
    %988 = vmatprep.subr.bf16.mxu0 0
    %989 = vmatpush1.bf16.msra.mxu0 %v967
    %990 = vmatprep.subr.bf16.mxu0 0
    %991 = vmatpush1.bf16.msra.mxu0 %v968
    %992 = vmatprep.subr.bf16.mxu0 0
    %993 = vmatpush1.bf16.msra.mxu0 %v969
    %994 = vmatprep.subr.bf16.mxu0 0
    %995 = vmatpush1.bf16.msra.mxu0 0
    %996 = vmatprep.subr.bf16.mxu0 0
    %997 = vmatpush1.bf16.msra.mxu0 0
    %998 = vmatprep.subr.bf16.mxu0 0
    %999 = vmatpush1.bf16.msra.mxu0 0
    %1000 = vmatprep.subr.bf16.mxu0 0
    %1001 = vmatpush1.bf16.msra.mxu0 0
    %1002 = vmatprep.subr.bf16.mxu0 0
    %1003 = vmatpush1.bf16.msra.mxu0 0
    %1004 = vmatprep.subr.bf16.mxu0 0
    %1005 = vmatpush1.bf16.msra.mxu0 0
    %1006 = vmatprep.subr.bf16.mxu0 0
    %1007 = vmatpush1.bf16.msra.mxu0 0
    %1008 = vmatprep.subr.bf16.mxu0 0
    %1009 = vmatpush1.bf16.msra.mxu0 0
    %1010 = vmatprep.mubr.bf16.mxu0 0
    %1011 = vmatmul.mubr.bf16.gmra.mrb[0].mxu0 %v908
    %v1012 = vpop.f32.mrb[0].mxu0
    %v1013 = vadd.f32 %v929, %v1012
    %v1014 = vpop.f32.mrb[0].mxu0
    %v1015 = vpop.f32.mrb[0].mxu0
    %v1016 = vadd.f32 %v929, %v1015
    %v1017 = vpop.f32.mrb[0].mxu0
    %1018 = vdwg.mxu0
    %1019 = vst [vmem:[#allocation11] sm:$0xff] %v1013
    %1020 = vst [vmem:[#allocation11 + $0x8] sm:$0xff] %v1016
    // Predicated region
    $region42: #{tpu_custom_call.1} parent=1 // pred_check
      _
    $region43: #{tpu_custom_call.1} parent=1 // pred_check_branch
      %1022 = sbr.rel (0) target = $region45
    $region44: #{tpu_custom_call.1} parent=1 // pred_region
      %s1024 = ssub.s32 256, 256
      %1025 = vsyncadd [#allocation4], %s1024
      %s1026 = sshll.u32 [#allocation11], 4
      %s1027 = int_to_ptr.vmem [resolvable:$true] %s1026
      %1032 = dma.vmem_to_hbm [thread:$0]  %s1027, 256, %s5, [#allocation4], 128, 128, 8
    $region45: #{tpu_custom_call.1} parent=1 // pred_fallthru
      _
    // Predicated region
    $region46: #{tpu_custom_call.1} parent=1 // pred_check
      _
    $region47: #{tpu_custom_call.1} parent=1 // pred_check_branch
      %1034 = sbr.rel (0) target = $region49
    $region48: #{tpu_custom_call.1} parent=1 // pred_region
      %1035 = dma.done [#allocation4], 256
    $region49: #{tpu_custom_call.1} parent=1 // pred_fallthru
      _
    %1036 = vsyncpa [#allocation3], 1
    %1037 = vsyncpa [#allocation6], 1
    %1038 = vsyncpa [#allocation9], 1
    %1039 = vsyncpa [#allocation4], 1

// kernel: tpu_custom_call.1
$region0: #{tpu_custom_call.1}
  #allocation0 [shape = 'u32[]', space=smem, size = 0x4, offset = 0x4, fixed_abs, tag = 'smem constant byte address 0x4 - core index']
  #allocation1 [shape = 'u32[144,128]{1,0:T(1,128)}', space=vmem, size = 0x12000, scoped, tag = 'internal scratch']
  %s0 = inlined_call_operand.hbm [shape: f32[16,1024], index: 0, kind: input, shape index: {}]
  %s1 = inlined_call_operand.hbm [shape: f32[3,128], index: 1, kind: input, shape index: {}]
  %s2 = inlined_call_operand.hbm [shape: bf16[1024,128], index: 2, kind: input, shape index: {}]
  %s3 = inlined_call_operand.hbm [shape: bf16[128,128], index: 3, kind: input, shape index: {}]
  %s4 = inlined_call_operand.hbm [shape: bf16[128,128], index: 4, kind: input, shape index: {}]
  %s5 = inlined_call_operand.hbm [shape: f32[16,128], index: 5, kind: output, shape index: {}]
  %s6 = sld [smem:[#allocation0]]
  $region50: #{tpu_custom_call.1} parent=0
    _
  %s8 = ssub.s32 1, %s6
  %s9 = scalar_select 0, %s8, %s6
  $region1: #{tpu_custom_call.1} parent=0
    #allocation2 [shape = 'u8[65536]{0}', space=vmem, size = 0x10000, scoped, tag = 'input window, operand 0, single buffered']
    #allocation3 [shape = 's32[1]{0}', space=sflag, size = 0x4, scoped, tag = 'scoped memory for tpu_custom_call.1']
    #allocation4 [shape = 's32[1]{0}', space=sflag, size = 0x4, scoped, tag = 'scoped memory for tpu_custom_call.1']
    #allocation5 [shape = 'u8[2048]{0}', space=vmem, size = 0x800, scoped, tag = 'input window, operand 1, single buffered']
    #allocation6 [shape = 's32[1]{0}', space=sflag, size = 0x4, scoped, tag = 'scoped memory for tpu_custom_call.1']
    #allocation7 [shape = 'u8[262144]{0}', space=vmem, size = 0x40000, scoped, tag = 'input window, operand 2, single buffered']
    #allocation8 [shape = 'u8[32768]{0}', space=vmem, size = 0x8000, scoped, tag = 'input window, operand 3, single buffered']
    #allocation9 [shape = 's32[1]{0}', space=sflag, size = 0x4, scoped, tag = 'scoped memory for tpu_custom_call.1']
    #allocation10 [shape = 'u8[32768]{0}', space=vmem, size = 0x8000, scoped, tag = 'input window, operand 4, single buffered']
    #allocation11 [shape = 'u8[8192]{0}', space=vmem, size = 0x2000, scoped, tag = 'output window, operand 0, single buffered']
    %10 = vsyncpa [#allocation3], 0
    %11 = vsyncpa [#allocation6], 0
    %12 = vsyncpa [#allocation9], 0
    %13 = vsyncpa [#allocation4], 0
    // Predicated region
    $region2: #{tpu_custom_call.1} parent=1 // pred_check
      _
    $region3: #{tpu_custom_call.1} parent=1 // pred_check_branch
      %15 = sbr.rel (0) target = $region5
    $region4: #{tpu_custom_call.1} parent=1 // pred_region
      %s17 = ssub.s32 2048, 2048
      %18 = vsyncadd [#allocation3], %s17
      %s19 = sshll.u32 [#allocation2], 4
      %s20 = int_to_ptr.vmem [resolvable:$true] %s19
      %25 = dma.hbm_to_vmem [thread:$0]  %s0, 2048, %s20, [#allocation3], 1024, 1024, 64
    $region5: #{tpu_custom_call.1} parent=1 // pred_fallthru
      _
    // Predicated region
    $region6: #{tpu_custom_call.1} parent=1 // pred_check
      _
    $region7: #{tpu_custom_call.1} parent=1 // pred_check_branch
      %27 = sbr.rel (0) target = $region9
    $region8: #{tpu_custom_call.1} parent=1 // pred_region
      %s29 = ssub.s32 64, 64
      %30 = vsyncadd [#allocation6], %s29
      %s32 = sshll.u32 [#allocation5], 4
      %s33 = int_to_ptr.vmem [resolvable:$true] %s32
      %35 = dma.hbm_to_vmem [thread:$0]  %s1, 64, %s33, [#allocation6]
    $region9: #{tpu_custom_call.1} parent=1 // pred_fallthru
      _
    // Predicated region
    $region10: #{tpu_custom_call.1} parent=1 // pred_check
      _
    $region11: #{tpu_custom_call.1} parent=1 // pred_check_branch
      %37 = sbr.rel (0) target = $region13
    $region12: #{tpu_custom_call.1} parent=1 // pred_region
      %s39 = ssub.s32 8192, 8192
      %40 = vsyncadd [#allocation6], %s39
      %s41 = sshll.u32 [#allocation7], 4
      %s42 = int_to_ptr.vmem [resolvable:$true] %s41
      %47 = dma.hbm_to_vmem [thread:$0]  %s2, 8192, %s42, [#allocation6], 64, 64, 4
    $region13: #{tpu_custom_call.1} parent=1 // pred_fallthru
      _
    // Predicated region
    $region14: #{tpu_custom_call.1} parent=1 // pred_check
      _
    $region15: #{tpu_custom_call.1} parent=1 // pred_check_branch
      %49 = sbr.rel (0) target = $region17
    $region16: #{tpu_custom_call.1} parent=1 // pred_region
      %s51 = ssub.s32 1024, 1024
      %52 = vsyncadd [#allocation9], %s51
      %s53 = sshll.u32 [#allocation8], 4
      %s54 = int_to_ptr.vmem [resolvable:$true] %s53
      %59 = dma.hbm_to_vmem [thread:$0]  %s3, 1024, %s54, [#allocation9], 64, 64, 4
    $region17: #{tpu_custom_call.1} parent=1 // pred_fallthru
      _
    // Predicated region
    $region18: #{tpu_custom_call.1} parent=1 // pred_check
      _
    $region19: #{tpu_custom_call.1} parent=1 // pred_check_branch
      %61 = sbr.rel (0) target = $region21
    $region20: #{tpu_custom_call.1} parent=1 // pred_region
      %s63 = ssub.s32 1024, 1024
      %64 = vsyncadd [#allocation9], %s63
      %s65 = sshll.u32 [#allocation10], 4
      %s66 = int_to_ptr.vmem [resolvable:$true] %s65
      %71 = dma.hbm_to_vmem [thread:$0]  %s4, 1024, %s66, [#allocation9], 64, 64, 4
    $region21: #{tpu_custom_call.1} parent=1 // pred_fallthru
      _
    // Predicated region
    $region22: #{tpu_custom_call.1} parent=1 // pred_check
      _
    $region23: #{tpu_custom_call.1} parent=1 // pred_check_branch
      %73 = sbr.rel (0) target = $region25
    $region24: #{tpu_custom_call.1} parent=1 // pred_region
      %74 = dma.done [#allocation3], 2048
    $region25: #{tpu_custom_call.1} parent=1 // pred_fallthru
      _
    // Predicated region
    $region26: #{tpu_custom_call.1} parent=1 // pred_check
      _
    $region27: #{tpu_custom_call.1} parent=1 // pred_check_branch
      %76 = sbr.rel (0) target = $region29
    $region28: #{tpu_custom_call.1} parent=1 // pred_region
      %77 = dma.done [#allocation6], 64
    $region29: #{tpu_custom_call.1} parent=1 // pred_fallthru
      _
    // Predicated region
    $region30: #{tpu_custom_call.1} parent=1 // pred_check
      _
    $region31: #{tpu_custom_call.1} parent=1 // pred_check_branch
      %79 = sbr.rel (0) target = $region33
    $region32: #{tpu_custom_call.1} parent=1 // pred_region
      %80 = dma.done [#allocation6], 8192
    $region33: #{tpu_custom_call.1} parent=1 // pred_fallthru
      _
    // Predicated region
    $region34: #{tpu_custom_call.1} parent=1 // pred_check
      _
    $region35: #{tpu_custom_call.1} parent=1 // pred_check_branch
      %82 = sbr.rel (0) target = $region37
    $region36: #{tpu_custom_call.1} parent=1 // pred_region
      %83 = dma.done [#allocation9], 1024
    $region37: #{tpu_custom_call.1} parent=1 // pred_fallthru
      _
    // Predicated region
    $region38: #{tpu_custom_call.1} parent=1 // pred_check
      _
    $region39: #{tpu_custom_call.1} parent=1 // pred_check_branch
      %85 = sbr.rel (0) target = $region41
    $region40: #{tpu_custom_call.1} parent=1 // pred_region
      %86 = dma.done [#allocation9], 1024
    $region41: #{tpu_custom_call.1} parent=1 // pred_fallthru
      _
    %v88 = vld [vmem:[#allocation2] sm:$0xff]
    %v89 = vld [vmem:[#allocation2 + $0x8] sm:$0xff]
    %v90 = vld [vmem:[#allocation2 + $0x10] sm:$0xff]
    %v91 = vld [vmem:[#allocation2 + $0x18] sm:$0xff]
    %v92 = vld [vmem:[#allocation2 + $0x20] sm:$0xff]
    %v93 = vld [vmem:[#allocation2 + $0x28] sm:$0xff]
    %v94 = vld [vmem:[#allocation2 + $0x30] sm:$0xff]
    %v95 = vld [vmem:[#allocation2 + $0x38] sm:$0xff]
    %v96 = vld [vmem:[#allocation2 + $0x40] sm:$0xff]
    %v97 = vld [vmem:[#allocation2 + $0x48] sm:$0xff]
    %v98 = vld [vmem:[#allocation2 + $0x50] sm:$0xff]
    %v99 = vld [vmem:[#allocation2 + $0x58] sm:$0xff]
    %v100 = vld [vmem:[#allocation2 + $0x60] sm:$0xff]
    %v101 = vld [vmem:[#allocation2 + $0x68] sm:$0xff]
    %v102 = vld [vmem:[#allocation2 + $0x70] sm:$0xff]
    %v103 = vld [vmem:[#allocation2 + $0x78] sm:$0xff]
    %v104 = vpack.c.bf16 %v96, %v88
    %v105 = vpack.c.bf16 %v97, %v89
    %v106 = vpack.c.bf16 %v98, %v90
    %v107 = vpack.c.bf16 %v99, %v91
    %v108 = vpack.c.bf16 %v100, %v92
    %v109 = vpack.c.bf16 %v101, %v93
    %v110 = vpack.c.bf16 %v102, %v94
    %v111 = vpack.c.bf16 %v103, %v95
    %v112 = vld [vmem:[#allocation7] sm:$0xf]
    %v113 = vld [vmem:[#allocation7 + $0x4] sm:$0xf]
    %v114 = vld [vmem:[#allocation7 + $0x8] sm:$0xf]
    %v115 = vld [vmem:[#allocation7 + $0xc] sm:$0xf]
    %v116 = vld [vmem:[#allocation7 + $0x10] sm:$0xf]
    %v117 = vld [vmem:[#allocation7 + $0x14] sm:$0xf]
    %v118 = vld [vmem:[#allocation7 + $0x18] sm:$0xf]
    %v119 = vld [vmem:[#allocation7 + $0x1c] sm:$0xf]
    %v120 = vld [vmem:[#allocation7 + $0x20] sm:$0xf]
    %v121 = vld [vmem:[#allocation7 + $0x24] sm:$0xf]
    %v122 = vld [vmem:[#allocation7 + $0x28] sm:$0xf]
    %v123 = vld [vmem:[#allocation7 + $0x2c] sm:$0xf]
    %v124 = vld [vmem:[#allocation7 + $0x30] sm:$0xf]
    %v125 = vld [vmem:[#allocation7 + $0x34] sm:$0xf]
    %v126 = vld [vmem:[#allocation7 + $0x38] sm:$0xf]
    %v127 = vld [vmem:[#allocation7 + $0x3c] sm:$0xf]
    %v128 = vld [vmem:[#allocation7 + $0x40] sm:$0xf]
    %v129 = vld [vmem:[#allocation7 + $0x44] sm:$0xf]
    %v130 = vld [vmem:[#allocation7 + $0x48] sm:$0xf]
    %v131 = vld [vmem:[#allocation7 + $0x4c] sm:$0xf]
    %v132 = vld [vmem:[#allocation7 + $0x50] sm:$0xf]
    %v133 = vld [vmem:[#allocation7 + $0x54] sm:$0xf]
    %v134 = vld [vmem:[#allocation7 + $0x58] sm:$0xf]
    %v135 = vld [vmem:[#allocation7 + $0x5c] sm:$0xf]
    %v136 = vld [vmem:[#allocation7 + $0x60] sm:$0xf]
    %v137 = vld [vmem:[#allocation7 + $0x64] sm:$0xf]
    %v138 = vld [vmem:[#allocation7 + $0x68] sm:$0xf]
    %v139 = vld [vmem:[#allocation7 + $0x6c] sm:$0xf]
    %v140 = vld [vmem:[#allocation7 + $0x70] sm:$0xf]
    %v141 = vld [vmem:[#allocation7 + $0x74] sm:$0xf]
    %v142 = vld [vmem:[#allocation7 + $0x78] sm:$0xf]
    %v143 = vld [vmem:[#allocation7 + $0x7c] sm:$0xf]
    %v144 = vld [vmem:[#allocation7 + $0x80] sm:$0xf]
    %v145 = vld [vmem:[#allocation7 + $0x84] sm:$0xf]
    %v146 = vld [vmem:[#allocation7 + $0x88] sm:$0xf]
    %v147 = vld [vmem:[#allocation7 + $0x8c] sm:$0xf]
    %v148 = vld [vmem:[#allocation7 + $0x90] sm:$0xf]
    %v149 = vld [vmem:[#allocation7 + $0x94] sm:$0xf]
    %v150 = vld [vmem:[#allocation7 + $0x98] sm:$0xf]
    %v151 = vld [vmem:[#allocation7 + $0x9c] sm:$0xf]
    %v152 = vld [vmem:[#allocation7 + $0xa0] sm:$0xf]
    %v153 = vld [vmem:[#allocation7 + $0xa4] sm:$0xf]
    %v154 = vld [vmem:[#allocation7 + $0xa8] sm:$0xf]
    %v155 = vld [vmem:[#allocation7 + $0xac] sm:$0xf]
    %v156 = vld [vmem:[#allocation7 + $0xb0] sm:$0xf]
    %v157 = vld [vmem:[#allocation7 + $0xb4] sm:$0xf]
    %v158 = vld [vmem:[#allocation7 + $0xb8] sm:$0xf]
    %v159 = vld [vmem:[#allocation7 + $0xbc] sm:$0xf]
    %v160 = vld [vmem:[#allocation7 + $0xc0] sm:$0xf]
    %v161 = vld [vmem:[#allocation7 + $0xc4] sm:$0xf]
    %v162 = vld [vmem:[#allocation7 + $0xc8] sm:$0xf]
    %v163 = vld [vmem:[#allocation7 + $0xcc] sm:$0xf]
    %v164 = vld [vmem:[#allocation7 + $0xd0] sm:$0xf]
    %v165 = vld [vmem:[#allocation7 + $0xd4] sm:$0xf]
    %v166 = vld [vmem:[#allocation7 + $0xd8] sm:$0xf]
    %v167 = vld [vmem:[#allocation7 + $0xdc] sm:$0xf]
    %v168 = vld [vmem:[#allocation7 + $0xe0] sm:$0xf]
    %v169 = vld [vmem:[#allocation7 + $0xe4] sm:$0xf]
    %v170 = vld [vmem:[#allocation7 + $0xe8] sm:$0xf]
    %v171 = vld [vmem:[#allocation7 + $0xec] sm:$0xf]
    %v172 = vld [vmem:[#allocation7 + $0xf0] sm:$0xf]
    %v173 = vld [vmem:[#allocation7 + $0xf4] sm:$0xf]
    %v174 = vld [vmem:[#allocation7 + $0xf8] sm:$0xf]
    %v175 = vld [vmem:[#allocation7 + $0xfc] sm:$0xf]
    %v176 = vld [vmem:[#allocation7 + $0x100] sm:$0xf]
    %v177 = vld [vmem:[#allocation7 + $0x104] sm:$0xf]
    %v178 = vld [vmem:[#allocation7 + $0x108] sm:$0xf]
    %v179 = vld [vmem:[#allocation7 + $0x10c] sm:$0xf]
    %v180 = vld [vmem:[#allocation7 + $0x110] sm:$0xf]
    %v181 = vld [vmem:[#allocation7 + $0x114] sm:$0xf]
    %v182 = vld [vmem:[#allocation7 + $0x118] sm:$0xf]
    %v183 = vld [vmem:[#allocation7 + $0x11c] sm:$0xf]
    %v184 = vld [vmem:[#allocation7 + $0x120] sm:$0xf]
    %v185 = vld [vmem:[#allocation7 + $0x124] sm:$0xf]
    %v186 = vld [vmem:[#allocation7 + $0x128] sm:$0xf]
    %v187 = vld [vmem:[#allocation7 + $0x12c] sm:$0xf]
    %v188 = vld [vmem:[#allocation7 + $0x130] sm:$0xf]
    %v189 = vld [vmem:[#allocation7 + $0x134] sm:$0xf]
    %v190 = vld [vmem:[#allocation7 + $0x138] sm:$0xf]
    %v191 = vld [vmem:[#allocation7 + $0x13c] sm:$0xf]
    %v192 = vld [vmem:[#allocation7 + $0x140] sm:$0xf]
    %v193 = vld [vmem:[#allocation7 + $0x144] sm:$0xf]
    %v194 = vld [vmem:[#allocation7 + $0x148] sm:$0xf]
    %v195 = vld [vmem:[#allocation7 + $0x14c] sm:$0xf]
    %v196 = vld [vmem:[#allocation7 + $0x150] sm:$0xf]
    %v197 = vld [vmem:[#allocation7 + $0x154] sm:$0xf]
    %v198 = vld [vmem:[#allocation7 + $0x158] sm:$0xf]
    %v199 = vld [vmem:[#allocation7 + $0x15c] sm:$0xf]
    %v200 = vld [vmem:[#allocation7 + $0x160] sm:$0xf]
    %v201 = vld [vmem:[#allocation7 + $0x164] sm:$0xf]
    %v202 = vld [vmem:[#allocation7 + $0x168] sm:$0xf]
    %v203 = vld [vmem:[#allocation7 + $0x16c] sm:$0xf]
    %v204 = vld [vmem:[#allocation7 + $0x170] sm:$0xf]
    %v205 = vld [vmem:[#allocation7 + $0x174] sm:$0xf]
    %v206 = vld [vmem:[#allocation7 + $0x178] sm:$0xf]
    %v207 = vld [vmem:[#allocation7 + $0x17c] sm:$0xf]
    %v208 = vld [vmem:[#allocation7 + $0x180] sm:$0xf]
    %v209 = vld [vmem:[#allocation7 + $0x184] sm:$0xf]
    %v210 = vld [vmem:[#allocation7 + $0x188] sm:$0xf]
    %v211 = vld [vmem:[#allocation7 + $0x18c] sm:$0xf]
    %v212 = vld [vmem:[#allocation7 + $0x190] sm:$0xf]
    %v213 = vld [vmem:[#allocation7 + $0x194] sm:$0xf]
    %v214 = vld [vmem:[#allocation7 + $0x198] sm:$0xf]
    %v215 = vld [vmem:[#allocation7 + $0x19c] sm:$0xf]
    %v216 = vld [vmem:[#allocation7 + $0x1a0] sm:$0xf]
    %v217 = vld [vmem:[#allocation7 + $0x1a4] sm:$0xf]
    %v218 = vld [vmem:[#allocation7 + $0x1a8] sm:$0xf]
    %v219 = vld [vmem:[#allocation7 + $0x1ac] sm:$0xf]
    %v220 = vld [vmem:[#allocation7 + $0x1b0] sm:$0xf]
    %v221 = vld [vmem:[#allocation7 + $0x1b4] sm:$0xf]
    %v222 = vld [vmem:[#allocation7 + $0x1b8] sm:$0xf]
    %v223 = vld [vmem:[#allocation7 + $0x1bc] sm:$0xf]
    %v224 = vld [vmem:[#allocation7 + $0x1c0] sm:$0xf]
    %v225 = vld [vmem:[#allocation7 + $0x1c4] sm:$0xf]
    %v226 = vld [vmem:[#allocation7 + $0x1c8] sm:$0xf]
    %v227 = vld [vmem:[#allocation7 + $0x1cc] sm:$0xf]
    %v228 = vld [vmem:[#allocation7 + $0x1d0] sm:$0xf]
    %v229 = vld [vmem:[#allocation7 + $0x1d4] sm:$0xf]
    %v230 = vld [vmem:[#allocation7 + $0x1d8] sm:$0xf]
    %v231 = vld [vmem:[#allocation7 + $0x1dc] sm:$0xf]
    %v232 = vld [vmem:[#allocation7 + $0x1e0] sm:$0xf]
    %v233 = vld [vmem:[#allocation7 + $0x1e4] sm:$0xf]
    %v234 = vld [vmem:[#allocation7 + $0x1e8] sm:$0xf]
    %v235 = vld [vmem:[#allocation7 + $0x1ec] sm:$0xf]
    %v236 = vld [vmem:[#allocation7 + $0x1f0] sm:$0xf]
    %v237 = vld [vmem:[#allocation7 + $0x1f4] sm:$0xf]
    %v238 = vld [vmem:[#allocation7 + $0x1f8] sm:$0xf]
    %v239 = vld [vmem:[#allocation7 + $0x1fc] sm:$0xf]
    %v240 = vld [vmem:[#allocation5] sm:$0x1]
    %v241 = vlaneseq
    %v242 = vshrl.u32 %v241, 7
    %v243 = vsub.s32 0, %v242
    %v244 = vrot.slane %v240, %v243
    %v373 = vunpack.c.l.b16 %v112
    %v374 = vunpack.c.l.b16 %v113
    %v375 = vunpack.c.l.b16 %v114
    %v376 = vunpack.c.l.b16 %v115
    %v377 = vunpack.c.l.b16 %v116
    %v378 = vunpack.c.l.b16 %v117
    %v379 = vunpack.c.l.b16 %v118
    %v380 = vunpack.c.l.b16 %v119
    %v381 = vunpack.c.l.b16 %v120
    %v382 = vunpack.c.l.b16 %v121
    %v383 = vunpack.c.l.b16 %v122
    %v384 = vunpack.c.l.b16 %v123
    %v385 = vunpack.c.l.b16 %v124
    %v386 = vunpack.c.l.b16 %v125
    %v387 = vunpack.c.l.b16 %v126
    %v388 = vunpack.c.l.b16 %v127
    %v389 = vunpack.c.l.b16 %v128
    %v390 = vunpack.c.l.b16 %v129
    %v391 = vunpack.c.l.b16 %v130
    %v392 = vunpack.c.l.b16 %v131
    %v393 = vunpack.c.l.b16 %v132
    %v394 = vunpack.c.l.b16 %v133
    %v395 = vunpack.c.l.b16 %v134
    %v396 = vunpack.c.l.b16 %v135
    %v397 = vunpack.c.l.b16 %v136
    %v398 = vunpack.c.l.b16 %v137
    %v399 = vunpack.c.l.b16 %v138
    %v400 = vunpack.c.l.b16 %v139
    %v401 = vunpack.c.l.b16 %v140
    %v402 = vunpack.c.l.b16 %v141
    %v403 = vunpack.c.l.b16 %v142
    %v404 = vunpack.c.l.b16 %v143
    %v405 = vunpack.c.l.b16 %v144
    %v406 = vunpack.c.l.b16 %v145
    %v407 = vunpack.c.l.b16 %v146
    %v408 = vunpack.c.l.b16 %v147
    %v409 = vunpack.c.l.b16 %v148
    %v410 = vunpack.c.l.b16 %v149
    %v411 = vunpack.c.l.b16 %v150
    %v412 = vunpack.c.l.b16 %v151
    %v413 = vunpack.c.l.b16 %v152
    %v414 = vunpack.c.l.b16 %v153
    %v415 = vunpack.c.l.b16 %v154
    %v416 = vunpack.c.l.b16 %v155
    %v417 = vunpack.c.l.b16 %v156
    %v418 = vunpack.c.l.b16 %v157
    %v419 = vunpack.c.l.b16 %v158
    %v420 = vunpack.c.l.b16 %v159
    %v421 = vunpack.c.l.b16 %v160
    %v422 = vunpack.c.l.b16 %v161
    %v423 = vunpack.c.l.b16 %v162
    %v424 = vunpack.c.l.b16 %v163
    %v425 = vunpack.c.l.b16 %v164
    %v426 = vunpack.c.l.b16 %v165
    %v427 = vunpack.c.l.b16 %v166
    %v428 = vunpack.c.l.b16 %v167
    %v429 = vunpack.c.l.b16 %v168
    %v430 = vunpack.c.l.b16 %v169
    %v431 = vunpack.c.l.b16 %v170
    %v432 = vunpack.c.l.b16 %v171
    %v433 = vunpack.c.l.b16 %v172
    %v434 = vunpack.c.l.b16 %v173
    %v435 = vunpack.c.l.b16 %v174
    %v436 = vunpack.c.l.b16 %v175
    %v437 = vunpack.c.l.b16 %v176
    %v438 = vunpack.c.l.b16 %v177
    %v439 = vunpack.c.l.b16 %v178
    %v440 = vunpack.c.l.b16 %v179
    %v441 = vunpack.c.l.b16 %v180
    %v442 = vunpack.c.l.b16 %v181
    %v443 = vunpack.c.l.b16 %v182
    %v444 = vunpack.c.l.b16 %v183
    %v445 = vunpack.c.l.b16 %v184
    %v446 = vunpack.c.l.b16 %v185
    %v447 = vunpack.c.l.b16 %v186
    %v448 = vunpack.c.l.b16 %v187
    %v449 = vunpack.c.l.b16 %v188
    %v450 = vunpack.c.l.b16 %v189
    %v451 = vunpack.c.l.b16 %v190
    %v452 = vunpack.c.l.b16 %v191
    %v453 = vunpack.c.l.b16 %v192
    %v454 = vunpack.c.l.b16 %v193
    %v455 = vunpack.c.l.b16 %v194
    %v456 = vunpack.c.l.b16 %v195
    %v457 = vunpack.c.l.b16 %v196
    %v458 = vunpack.c.l.b16 %v197
    %v459 = vunpack.c.l.b16 %v198
    %v460 = vunpack.c.l.b16 %v199
    %v461 = vunpack.c.l.b16 %v200
    %v462 = vunpack.c.l.b16 %v201
    %v463 = vunpack.c.l.b16 %v202
    %v464 = vunpack.c.l.b16 %v203
    %v465 = vunpack.c.l.b16 %v204
    %v466 = vunpack.c.l.b16 %v205
    %v467 = vunpack.c.l.b16 %v206
    %v468 = vunpack.c.l.b16 %v207
    %v469 = vunpack.c.l.b16 %v208
    %v470 = vunpack.c.l.b16 %v209
    %v471 = vunpack.c.l.b16 %v210
    %v472 = vunpack.c.l.b16 %v211
    %v473 = vunpack.c.l.b16 %v212
    %v474 = vunpack.c.l.b16 %v213
    %v475 = vunpack.c.l.b16 %v214
    %v476 = vunpack.c.l.b16 %v215
    %v477 = vunpack.c.l.b16 %v216
    %v478 = vunpack.c.l.b16 %v217
    %v479 = vunpack.c.l.b16 %v218
    %v480 = vunpack.c.l.b16 %v219
    %v481 = vunpack.c.l.b16 %v220
    %v482 = vunpack.c.l.b16 %v221
    %v483 = vunpack.c.l.b16 %v222
    %v484 = vunpack.c.l.b16 %v223
    %v485 = vunpack.c.l.b16 %v224
    %v486 = vunpack.c.l.b16 %v225
    %v487 = vunpack.c.l.b16 %v226
    %v488 = vunpack.c.l.b16 %v227
    %v489 = vunpack.c.l.b16 %v228
    %v490 = vunpack.c.l.b16 %v229
    %v491 = vunpack.c.l.b16 %v230
    %v492 = vunpack.c.l.b16 %v231
    %v493 = vunpack.c.l.b16 %v232
    %v494 = vunpack.c.l.b16 %v233
    %v495 = vunpack.c.l.b16 %v234
    %v496 = vunpack.c.l.b16 %v235
    %v497 = vunpack.c.l.b16 %v236
    %v498 = vunpack.c.l.b16 %v237
    %v499 = vunpack.c.l.b16 %v238
    %v500 = vunpack.c.l.b16 %v239
    %v501 = vpack.c.b16 %v374, %v373
    %v502 = vpack.c.b16 %v376, %v375
    %v503 = vpack.c.b16 %v378, %v377
    %v504 = vpack.c.b16 %v380, %v379
    %v505 = vpack.c.b16 %v382, %v381
    %v506 = vpack.c.b16 %v384, %v383
    %v507 = vpack.c.b16 %v386, %v385
    %v508 = vpack.c.b16 %v388, %v387
    %v509 = vpack.c.b16 %v390, %v389
    %v510 = vpack.c.b16 %v392, %v391
    %v511 = vpack.c.b16 %v394, %v393
    %v512 = vpack.c.b16 %v396, %v395
    %v513 = vpack.c.b16 %v398, %v397
    %v514 = vpack.c.b16 %v400, %v399
    %v515 = vpack.c.b16 %v402, %v401
    %v516 = vpack.c.b16 %v404, %v403
    %v517 = vpack.c.b16 %v406, %v405
    %v518 = vpack.c.b16 %v408, %v407
    %v519 = vpack.c.b16 %v410, %v409
    %v520 = vpack.c.b16 %v412, %v411
    %v521 = vpack.c.b16 %v414, %v413
    %v522 = vpack.c.b16 %v416, %v415
    %v523 = vpack.c.b16 %v418, %v417
    %v524 = vpack.c.b16 %v420, %v419
    %v525 = vpack.c.b16 %v422, %v421
    %v526 = vpack.c.b16 %v424, %v423
    %v527 = vpack.c.b16 %v426, %v425
    %v528 = vpack.c.b16 %v428, %v427
    %v529 = vpack.c.b16 %v430, %v429
    %v530 = vpack.c.b16 %v432, %v431
    %v531 = vpack.c.b16 %v434, %v433
    %v532 = vpack.c.b16 %v436, %v435
    %v533 = vpack.c.b16 %v438, %v437
    %v534 = vpack.c.b16 %v440, %v439
    %v535 = vpack.c.b16 %v442, %v441
    %v536 = vpack.c.b16 %v444, %v443
    %v537 = vpack.c.b16 %v446, %v445
    %v538 = vpack.c.b16 %v448, %v447
    %v539 = vpack.c.b16 %v450, %v449
    %v540 = vpack.c.b16 %v452, %v451
    %v541 = vpack.c.b16 %v454, %v453
    %v542 = vpack.c.b16 %v456, %v455
    %v543 = vpack.c.b16 %v458, %v457
    %v544 = vpack.c.b16 %v460, %v459
    %v545 = vpack.c.b16 %v462, %v461
    %v546 = vpack.c.b16 %v464, %v463
    %v547 = vpack.c.b16 %v466, %v465
    %v548 = vpack.c.b16 %v468, %v467
    %v549 = vpack.c.b16 %v470, %v469
    %v550 = vpack.c.b16 %v472, %v471
    %v551 = vpack.c.b16 %v474, %v473
    %v552 = vpack.c.b16 %v476, %v475
    %v553 = vpack.c.b16 %v478, %v477
    %v554 = vpack.c.b16 %v480, %v479
    %v555 = vpack.c.b16 %v482, %v481
    %v556 = vpack.c.b16 %v484, %v483
    %v557 = vpack.c.b16 %v486, %v485
    %v558 = vpack.c.b16 %v488, %v487
    %v559 = vpack.c.b16 %v490, %v489
    %v560 = vpack.c.b16 %v492, %v491
    %v561 = vpack.c.b16 %v494, %v493
    %v562 = vpack.c.b16 %v496, %v495
    %v563 = vpack.c.b16 %v498, %v497
    %v564 = vpack.c.b16 %v500, %v499
    %629 = vmatprep.subr.bf16.mxu0 0
    %630 = vmatpush1.bf16.msra.mxu0 %v501
    %631 = vmatprep.subr.bf16.mxu0 0
    %632 = vmatpush1.bf16.msra.mxu0 %v502
    %633 = vmatprep.subr.bf16.mxu0 0
    %634 = vmatpush1.bf16.msra.mxu0 %v503
    %635 = vmatprep.subr.bf16.mxu0 0
    %636 = vmatpush1.bf16.msra.mxu0 %v504
    %637 = vmatprep.subr.bf16.mxu0 0
    %638 = vmatpush1.bf16.msra.mxu0 %v505
    %639 = vmatprep.subr.bf16.mxu0 0
    %640 = vmatpush1.bf16.msra.mxu0 %v506
    %641 = vmatprep.subr.bf16.mxu0 0
    %642 = vmatpush1.bf16.msra.mxu0 %v507
    %643 = vmatprep.subr.bf16.mxu0 0
    %644 = vmatpush1.bf16.msra.mxu0 %v508
    %645 = vmatprep.subr.bf16.mxu0 0
    %646 = vmatpush1.bf16.msra.mxu0 %v509
    %647 = vmatprep.subr.bf16.mxu0 0
    %648 = vmatpush1.bf16.msra.mxu0 %v510
    %649 = vmatprep.subr.bf16.mxu0 0
    %650 = vmatpush1.bf16.msra.mxu0 %v511
    %651 = vmatprep.subr.bf16.mxu0 0
    %652 = vmatpush1.bf16.msra.mxu0 %v512
    %653 = vmatprep.subr.bf16.mxu0 0
    %654 = vmatpush1.bf16.msra.mxu0 %v513
    %655 = vmatprep.subr.bf16.mxu0 0
    %656 = vmatpush1.bf16.msra.mxu0 %v514
    %657 = vmatprep.subr.bf16.mxu0 0
    %658 = vmatpush1.bf16.msra.mxu0 %v515
    %659 = vmatprep.subr.bf16.mxu0 0
    %660 = vmatpush1.bf16.msra.mxu0 %v516
    %661 = vmatprep.mubr.bf16.mxu0 %v105
    %662 = vmatmul.mubr.bf16.gmra.mrb[0].mxu0 %v104
    %v663 = vpop.f32.mrb[0].mxu0
    %v664 = vadd.f32 %v244, %v663
    %v665 = vpop.f32.mrb[0].mxu0
    %v666 = vpop.f32.mrb[0].mxu0
    %v667 = vadd.f32 %v244, %v666
    %v668 = vpop.f32.mrb[0].mxu0
    %669 = vdwg.mxu0
    %670 = vmatprep.subr.bf16.mxu0 0
    %671 = vmatpush1.bf16.msra.mxu0 %v517
    %672 = vmatprep.subr.bf16.mxu0 0
    %673 = vmatpush1.bf16.msra.mxu0 %v518
    %674 = vmatprep.subr.bf16.mxu0 0
    %675 = vmatpush1.bf16.msra.mxu0 %v519
    %676 = vmatprep.subr.bf16.mxu0 0
    %677 = vmatpush1.bf16.msra.mxu0 %v520
    %678 = vmatprep.subr.bf16.mxu0 0
    %679 = vmatpush1.bf16.msra.mxu0 %v521
    %680 = vmatprep.subr.bf16.mxu0 0
    %681 = vmatpush1.bf16.msra.mxu0 %v522
    %682 = vmatprep.subr.bf16.mxu0 0
    %683 = vmatpush1.bf16.msra.mxu0 %v523
    %684 = vmatprep.subr.bf16.mxu0 0
    %685 = vmatpush1.bf16.msra.mxu0 %v524
    %686 = vmatprep.subr.bf16.mxu0 0
    %687 = vmatpush1.bf16.msra.mxu0 %v525
    %688 = vmatprep.subr.bf16.mxu0 0
    %689 = vmatpush1.bf16.msra.mxu0 %v526
    %690 = vmatprep.subr.bf16.mxu0 0
    %691 = vmatpush1.bf16.msra.mxu0 %v527
    %692 = vmatprep.subr.bf16.mxu0 0
    %693 = vmatpush1.bf16.msra.mxu0 %v528
    %694 = vmatprep.subr.bf16.mxu0 0
    %695 = vmatpush1.bf16.msra.mxu0 %v529
    %696 = vmatprep.subr.bf16.mxu0 0
    %697 = vmatpush1.bf16.msra.mxu0 %v530
    %698 = vmatprep.subr.bf16.mxu0 0
    %699 = vmatpush1.bf16.msra.mxu0 %v531
    %700 = vmatprep.subr.bf16.mxu0 0
    %701 = vmatpush1.bf16.msra.mxu0 %v532
    %702 = vmatprep.mubr.bf16.mxu0 %v107
    %703 = vmatmul.mubr.bf16.gmra.mrb[0].mxu0 %v106
    %v704 = vpop.f32.mrb[0].mxu0
    %v705 = vadd.f32 %v664, %v704
    %v706 = vpop.f32.mrb[0].mxu0
    %v707 = vpop.f32.mrb[0].mxu0
    %v708 = vadd.f32 %v667, %v707
    %v709 = vpop.f32.mrb[0].mxu0
    %710 = vdwg.mxu0
    %711 = vmatprep.subr.bf16.mxu0 0
    %712 = vmatpush1.bf16.msra.mxu0 %v533
    %713 = vmatprep.subr.bf16.mxu0 0
    %714 = vmatpush1.bf16.msra.mxu0 %v534
    %715 = vmatprep.subr.bf16.mxu0 0
    %716 = vmatpush1.bf16.msra.mxu0 %v535
    %717 = vmatprep.subr.bf16.mxu0 0
    %718 = vmatpush1.bf16.msra.mxu0 %v536
    %719 = vmatprep.subr.bf16.mxu0 0
    %720 = vmatpush1.bf16.msra.mxu0 %v537
    %721 = vmatprep.subr.bf16.mxu0 0
    %722 = vmatpush1.bf16.msra.mxu0 %v538
    %723 = vmatprep.subr.bf16.mxu0 0
    %724 = vmatpush1.bf16.msra.mxu0 %v539
    %725 = vmatprep.subr.bf16.mxu0 0
    %726 = vmatpush1.bf16.msra.mxu0 %v540
    %727 = vmatprep.subr.bf16.mxu0 0
    %728 = vmatpush1.bf16.msra.mxu0 %v541
    %729 = vmatprep.subr.bf16.mxu0 0
    %730 = vmatpush1.bf16.msra.mxu0 %v542
    %731 = vmatprep.subr.bf16.mxu0 0
    %732 = vmatpush1.bf16.msra.mxu0 %v543
    %733 = vmatprep.subr.bf16.mxu0 0
    %734 = vmatpush1.bf16.msra.mxu0 %v544
    %735 = vmatprep.subr.bf16.mxu0 0
    %736 = vmatpush1.bf16.msra.mxu0 %v545
    %737 = vmatprep.subr.bf16.mxu0 0
    %738 = vmatpush1.bf16.msra.mxu0 %v546
    %739 = vmatprep.subr.bf16.mxu0 0
    %740 = vmatpush1.bf16.msra.mxu0 %v547
    %741 = vmatprep.subr.bf16.mxu0 0
    %742 = vmatpush1.bf16.msra.mxu0 %v548
    %743 = vmatprep.mubr.bf16.mxu0 %v109
    %744 = vmatmul.mubr.bf16.gmra.mrb[0].mxu0 %v108
    %v745 = vpop.f32.mrb[0].mxu0
    %v746 = vadd.f32 %v705, %v745
    %v747 = vpop.f32.mrb[0].mxu0
    %v748 = vpop.f32.mrb[0].mxu0
    %v749 = vadd.f32 %v708, %v748
    %v750 = vpop.f32.mrb[0].mxu0
    %751 = vdwg.mxu0
    %752 = vmatprep.subr.bf16.mxu0 0
    %753 = vmatpush1.bf16.msra.mxu0 %v549
    %754 = vmatprep.subr.bf16.mxu0 0
    %755 = vmatpush1.bf16.msra.mxu0 %v550
    %756 = vmatprep.subr.bf16.mxu0 0
    %757 = vmatpush1.bf16.msra.mxu0 %v551
    %758 = vmatprep.subr.bf16.mxu0 0
    %759 = vmatpush1.bf16.msra.mxu0 %v552
    %760 = vmatprep.subr.bf16.mxu0 0
    %761 = vmatpush1.bf16.msra.mxu0 %v553
    %762 = vmatprep.subr.bf16.mxu0 0
    %763 = vmatpush1.bf16.msra.mxu0 %v554
    %764 = vmatprep.subr.bf16.mxu0 0
    %765 = vmatpush1.bf16.msra.mxu0 %v555
    %766 = vmatprep.subr.bf16.mxu0 0
    %767 = vmatpush1.bf16.msra.mxu0 %v556
    %768 = vmatprep.subr.bf16.mxu0 0
    %769 = vmatpush1.bf16.msra.mxu0 %v557
    %770 = vmatprep.subr.bf16.mxu0 0
    %771 = vmatpush1.bf16.msra.mxu0 %v558
    %772 = vmatprep.subr.bf16.mxu0 0
    %773 = vmatpush1.bf16.msra.mxu0 %v559
    %774 = vmatprep.subr.bf16.mxu0 0
    %775 = vmatpush1.bf16.msra.mxu0 %v560
    %776 = vmatprep.subr.bf16.mxu0 0
    %777 = vmatpush1.bf16.msra.mxu0 %v561
    %778 = vmatprep.subr.bf16.mxu0 0
    %779 = vmatpush1.bf16.msra.mxu0 %v562
    %780 = vmatprep.subr.bf16.mxu0 0
    %781 = vmatpush1.bf16.msra.mxu0 %v563
    %782 = vmatprep.subr.bf16.mxu0 0
    %783 = vmatpush1.bf16.msra.mxu0 %v564
    %784 = vmatprep.mubr.bf16.mxu0 %v111
    %785 = vmatmul.mubr.bf16.gmra.mrb[0].mxu0 %v110
    %v786 = vpop.f32.mrb[0].mxu0
    %v787 = vadd.f32 %v746, %v786
    %v788 = vpop.f32.mrb[0].mxu0
    %v789 = vpop.f32.mrb[0].mxu0
    %v790 = vadd.f32 %v749, %v789
    %v791 = vpop.f32.mrb[0].mxu0
    %792 = vdwg.mxu0
    %v793 = vtanh.pop %v787
    %v794 = vtanh.pop %v790
    %v795 = vpack.c.bf16 %v794, %v793
    %v796 = vld [vmem:[#allocation8] sm:$0xf]
    %v797 = vld [vmem:[#allocation8 + $0x4] sm:$0xf]
    %v798 = vld [vmem:[#allocation8 + $0x8] sm:$0xf]
    %v799 = vld [vmem:[#allocation8 + $0xc] sm:$0xf]
    %v800 = vld [vmem:[#allocation8 + $0x10] sm:$0xf]
    %v801 = vld [vmem:[#allocation8 + $0x14] sm:$0xf]
    %v802 = vld [vmem:[#allocation8 + $0x18] sm:$0xf]
    %v803 = vld [vmem:[#allocation8 + $0x1c] sm:$0xf]
    %v804 = vld [vmem:[#allocation8 + $0x20] sm:$0xf]
    %v805 = vld [vmem:[#allocation8 + $0x24] sm:$0xf]
    %v806 = vld [vmem:[#allocation8 + $0x28] sm:$0xf]
    %v807 = vld [vmem:[#allocation8 + $0x2c] sm:$0xf]
    %v808 = vld [vmem:[#allocation8 + $0x30] sm:$0xf]
    %v809 = vld [vmem:[#allocation8 + $0x34] sm:$0xf]
    %v810 = vld [vmem:[#allocation8 + $0x38] sm:$0xf]
    %v811 = vld [vmem:[#allocation8 + $0x3c] sm:$0xf]
    %v812 = vld [vmem:[#allocation5 + $0x1] sm:$0x1]
    %v813 = vlaneseq
    %v814 = vshrl.u32 %v813, 7
    %v815 = vsub.s32 0, %v814
    %v816 = vrot.slane %v812, %v815
    %v833 = vunpack.c.l.b16 %v796
    %v834 = vunpack.c.l.b16 %v797
    %v835 = vunpack.c.l.b16 %v798
    %v836 = vunpack.c.l.b16 %v799
    %v837 = vunpack.c.l.b16 %v800
    %v838 = vunpack.c.l.b16 %v801
    %v839 = vunpack.c.l.b16 %v802
    %v840 = vunpack.c.l.b16 %v803
    %v841 = vunpack.c.l.b16 %v804
    %v842 = vunpack.c.l.b16 %v805
    %v843 = vunpack.c.l.b16 %v806
    %v844 = vunpack.c.l.b16 %v807
    %v845 = vunpack.c.l.b16 %v808
    %v846 = vunpack.c.l.b16 %v809
    %v847 = vunpack.c.l.b16 %v810
    %v848 = vunpack.c.l.b16 %v811
    %v849 = vpack.c.b16 %v834, %v833
    %v850 = vpack.c.b16 %v836, %v835
    %v851 = vpack.c.b16 %v838, %v837
    %v852 = vpack.c.b16 %v840, %v839
    %v853 = vpack.c.b16 %v842, %v841
    %v854 = vpack.c.b16 %v844, %v843
    %v855 = vpack.c.b16 %v846, %v845
    %v856 = vpack.c.b16 %v848, %v847
    %865 = vmatprep.subr.bf16.mxu0 0
    %866 = vmatpush1.bf16.msra.mxu0 %v849
    %867 = vmatprep.subr.bf16.mxu0 0
    %868 = vmatpush1.bf16.msra.mxu0 %v850
    %869 = vmatprep.subr.bf16.mxu0 0
    %870 = vmatpush1.bf16.msra.mxu0 %v851
    %871 = vmatprep.subr.bf16.mxu0 0
    %872 = vmatpush1.bf16.msra.mxu0 %v852
    %873 = vmatprep.subr.bf16.mxu0 0
    %874 = vmatpush1.bf16.msra.mxu0 %v853
    %875 = vmatprep.subr.bf16.mxu0 0
    %876 = vmatpush1.bf16.msra.mxu0 %v854
    %877 = vmatprep.subr.bf16.mxu0 0
    %878 = vmatpush1.bf16.msra.mxu0 %v855
    %879 = vmatprep.subr.bf16.mxu0 0
    %880 = vmatpush1.bf16.msra.mxu0 %v856
    %881 = vmatprep.subr.bf16.mxu0 0
    %882 = vmatpush1.bf16.msra.mxu0 0
    %883 = vmatprep.subr.bf16.mxu0 0
    %884 = vmatpush1.bf16.msra.mxu0 0
    %885 = vmatprep.subr.bf16.mxu0 0
    %886 = vmatpush1.bf16.msra.mxu0 0
    %887 = vmatprep.subr.bf16.mxu0 0
    %888 = vmatpush1.bf16.msra.mxu0 0
    %889 = vmatprep.subr.bf16.mxu0 0
    %890 = vmatpush1.bf16.msra.mxu0 0
    %891 = vmatprep.subr.bf16.mxu0 0
    %892 = vmatpush1.bf16.msra.mxu0 0
    %893 = vmatprep.subr.bf16.mxu0 0
    %894 = vmatpush1.bf16.msra.mxu0 0
    %895 = vmatprep.subr.bf16.mxu0 0
    %896 = vmatpush1.bf16.msra.mxu0 0
    %897 = vmatprep.mubr.bf16.mxu0 0
    %898 = vmatmul.mubr.bf16.gmra.mrb[0].mxu0 %v795
    %v899 = vpop.f32.mrb[0].mxu0
    %v900 = vadd.f32 %v816, %v899
    %v901 = vpop.f32.mrb[0].mxu0
    %v902 = vpop.f32.mrb[0].mxu0
    %v903 = vadd.f32 %v816, %v902
    %v904 = vpop.f32.mrb[0].mxu0
    %905 = vdwg.mxu0
    %v906 = vtanh.pop %v900
    %v907 = vtanh.pop %v903
    %v908 = vpack.c.bf16 %v907, %v906
    %v909 = vld [vmem:[#allocation10] sm:$0xf]
    %v910 = vld [vmem:[#allocation10 + $0x4] sm:$0xf]
    %v911 = vld [vmem:[#allocation10 + $0x8] sm:$0xf]
    %v912 = vld [vmem:[#allocation10 + $0xc] sm:$0xf]
    %v913 = vld [vmem:[#allocation10 + $0x10] sm:$0xf]
    %v914 = vld [vmem:[#allocation10 + $0x14] sm:$0xf]
    %v915 = vld [vmem:[#allocation10 + $0x18] sm:$0xf]
    %v916 = vld [vmem:[#allocation10 + $0x1c] sm:$0xf]
    %v917 = vld [vmem:[#allocation10 + $0x20] sm:$0xf]
    %v918 = vld [vmem:[#allocation10 + $0x24] sm:$0xf]
    %v919 = vld [vmem:[#allocation10 + $0x28] sm:$0xf]
    %v920 = vld [vmem:[#allocation10 + $0x2c] sm:$0xf]
    %v921 = vld [vmem:[#allocation10 + $0x30] sm:$0xf]
    %v922 = vld [vmem:[#allocation10 + $0x34] sm:$0xf]
    %v923 = vld [vmem:[#allocation10 + $0x38] sm:$0xf]
    %v924 = vld [vmem:[#allocation10 + $0x3c] sm:$0xf]
    %v925 = vld [vmem:[#allocation5 + $0x2] sm:$0x1]
    %v926 = vlaneseq
    %v927 = vshrl.u32 %v926, 7
    %v928 = vsub.s32 0, %v927
    %v929 = vrot.slane %v925, %v928
    %v946 = vunpack.c.l.b16 %v909
    %v947 = vunpack.c.l.b16 %v910
    %v948 = vunpack.c.l.b16 %v911
    %v949 = vunpack.c.l.b16 %v912
    %v950 = vunpack.c.l.b16 %v913
    %v951 = vunpack.c.l.b16 %v914
    %v952 = vunpack.c.l.b16 %v915
    %v953 = vunpack.c.l.b16 %v916
    %v954 = vunpack.c.l.b16 %v917
    %v955 = vunpack.c.l.b16 %v918
    %v956 = vunpack.c.l.b16 %v919
    %v957 = vunpack.c.l.b16 %v920
    %v958 = vunpack.c.l.b16 %v921
    %v959 = vunpack.c.l.b16 %v922
    %v960 = vunpack.c.l.b16 %v923
    %v961 = vunpack.c.l.b16 %v924
    %v962 = vpack.c.b16 %v947, %v946
    %v963 = vpack.c.b16 %v949, %v948
    %v964 = vpack.c.b16 %v951, %v950
    %v965 = vpack.c.b16 %v953, %v952
    %v966 = vpack.c.b16 %v955, %v954
    %v967 = vpack.c.b16 %v957, %v956
    %v968 = vpack.c.b16 %v959, %v958
    %v969 = vpack.c.b16 %v961, %v960
    %978 = vmatprep.subr.bf16.mxu0 0
    %979 = vmatpush1.bf16.msra.mxu0 %v962
    %980 = vmatprep.subr.bf16.mxu0 0
    %981 = vmatpush1.bf16.msra.mxu0 %v963
    %982 = vmatprep.subr.bf16.mxu0 0
    %983 = vmatpush1.bf16.msra.mxu0 %v964
    %984 = vmatprep.subr.bf16.mxu0 0
    %985 = vmatpush1.bf16.msra.mxu0 %v965
    %986 = vmatprep.subr.bf16.mxu0 0
    %987 = vmatpush1.bf16.msra.mxu0 %v966
    %988 = vmatprep.subr.bf16.mxu0 0
    %989 = vmatpush1.bf16.msra.mxu0 %v967
    %990 = vmatprep.subr.bf16.mxu0 0
    %991 = vmatpush1.bf16.msra.mxu0 %v968
    %992 = vmatprep.subr.bf16.mxu0 0
    %993 = vmatpush1.bf16.msra.mxu0 %v969
    %994 = vmatprep.subr.bf16.mxu0 0
    %995 = vmatpush1.bf16.msra.mxu0 0
    %996 = vmatprep.subr.bf16.mxu0 0
    %997 = vmatpush1.bf16.msra.mxu0 0
    %998 = vmatprep.subr.bf16.mxu0 0
    %999 = vmatpush1.bf16.msra.mxu0 0
    %1000 = vmatprep.subr.bf16.mxu0 0
    %1001 = vmatpush1.bf16.msra.mxu0 0
    %1002 = vmatprep.subr.bf16.mxu0 0
    %1003 = vmatpush1.bf16.msra.mxu0 0
    %1004 = vmatprep.subr.bf16.mxu0 0
    %1005 = vmatpush1.bf16.msra.mxu0 0
    %1006 = vmatprep.subr.bf16.mxu0 0
    %1007 = vmatpush1.bf16.msra.mxu0 0
    %1008 = vmatprep.subr.bf16.mxu0 0
    %1009 = vmatpush1.bf16.msra.mxu0 0
    %1010 = vmatprep.mubr.bf16.mxu0 0
    %1011 = vmatmul.mubr.bf16.gmra.mrb[0].mxu0 %v908
    %v1012 = vpop.f32.mrb[0].mxu0
    %v1013 = vadd.f32 %v929, %v1012
    %v1014 = vpop.f32.mrb[0].mxu0
    %v1015 = vpop.f32.mrb[0].mxu0
    %v1016 = vadd.f32 %v929, %v1015
    %v1017 = vpop.f32.mrb[0].mxu0
    %1018 = vdwg.mxu0
    %1019 = vst [vmem:[#allocation11] sm:$0xff] %v1013
    %1020 = vst [vmem:[#allocation11 + $0x8] sm:$0xff] %v1016
    // Predicated region
    $region42: #{tpu_custom_call.1} parent=1 // pred_check
      _
    $region43: #{tpu_custom_call.1} parent=1 // pred_check_branch
      %1022 = sbr.rel (0) target = $region45
    $region44: #{tpu_custom_call.1} parent=1 // pred_region
      %s1024 = ssub.s32 256, 256
      %1025 = vsyncadd [#allocation4], %s1024
      %s1026 = sshll.u32 [#allocation11], 4
      %s1027 = int_to_ptr.vmem [resolvable:$true] %s1026
      %1032 = dma.vmem_to_hbm [thread:$0]  %s1027, 256, %s5, [#allocation4], 128, 128, 8
    $region45: #{tpu_custom_call.1} parent=1 // pred_fallthru
      _
    // Predicated region
    $region46: #{tpu_custom_call.1} parent=1 // pred_check
      _
    $region47: #{tpu_custom_call.1} parent=1 // pred_check_branch
      %1034 = sbr.rel (0) target = $region49
    $region48: #{tpu_custom_call.1} parent=1 // pred_region
      %1035 = dma.done [#allocation4], 256
    $region49: #{tpu_custom_call.1} parent=1 // pred_fallthru
      _
    %1036 = vsyncpa [#allocation3], 1
    %1037 = vsyncpa [#allocation6], 1
    %1038 = vsyncpa [#allocation9], 1
    %1039 = vsyncpa [#allocation4], 1

</llo_original>
